<compile_context>
chip_gen: v6e
topology: v6e:2x2x1
jax: 0.10.0
libtpu: 0.0.40
codegen_flags: <defaults>
</compile_context>

<pallas_src>
import math
import functools

import numpy as np
import jax
import jax.numpy as jnp
from jax.experimental import pallas as pl
from jax.experimental.pallas import tpu as pltpu


# ----------------------------- configuration -------------------------------
C0, C1, C2 = 3, 8, 16            # input / conv1 / conv2 channels
H = W = 16                       # input spatial size
HP, WP = H // 2, W // 2          # after pool1  (8, 8)
H3, W3 = HP // 2, WP // 2        # after pool2  (4, 4)
D1 = D2 = 64                     # classifier hidden sizes
NC = 10                          # num classes
NC_PAD = 128                     # lane-dense padded logits
K1 = 4 * (W + 2) * C0            # conv1 row-gathered K  (216)
K1_PAD = 256                     # padded K for clean lane/MXU tiles
N1 = WP * C1                     # 64  (lanes per pool-window position)
N2 = WP * C2                     # 128 (conv2 output lanes per row)
KFC1 = H3 * N2 - C2              # 496 (fc1 K after the in-lane pair max)
BATCH_TILE = 2


# ------------------------------ fused kernel --------------------------------
def _vgg_fused_kernel(patches_ref,    # (Bt, HP, 256)   bf16  row-gathered conv1 input
                      w1_ref,         # (256, 256)      bf16  banded conv1 (pool folded)
                      w2_ref,         # (3, 128, 128)   f32   banded conv2, one per dh
                      fc1_ref,        # (496, 64)       f32   permuted / zero-row fc1
                      fc23_ref,       # (64, 192)       f32   [fc2 | fc3 padded to 128]
                      bias_ref,       # (5, 256)        f32   all biases in one slab
                      o_ref,          # (Bt, 1, 128)    f32   padded logits
                      pad_ref,        # VMEM (Bt, HP+2, 128) f32  conv2 zero halo
                      flat_ref,       # VMEM (Bt, 512)  f32   lane-merged pool2 rows
                      *, bt):
    # ---- conv1 + bias + ReLU + 2x2/2 maxpool: ONE MXU matmul -----------------
    pat = patches_ref[...].reshape(bt * HP, K1_PAD)               # merge leading dims
    y1 = jnp.dot(pat, w1_ref[...], preferred_element_type=jnp.float32)
    y1 = jnp.maximum(y1 + bias_ref[0:1, :], 0.0)                  # (bt*HP, 4*N1)
    p1 = jnp.maximum(jnp.maximum(y1[:, 0:N1], y1[:, N1:2 * N1]),
                     jnp.maximum(y1[:, 2 * N1:3 * N1], y1[:, 3 * N1:4 * N1]))

    # ---- conv2 + bias + ReLU: lane-dense zero halo + 3 banded (dh) matmuls ---
    # Full zero each step (cheap: 20 rows) so the kernel is safe under
    # core-parallel grid partitioning; interior fully overwritten below.
    pad_ref[...] = jnp.zeros_like(pad_ref)
    pad_ref[:, 1:HP + 1, C1:C1 + WP * C1] = p1.reshape(bt, HP, WP * C1)
    acc = jnp.zeros((bt * HP, N2), jnp.float32)
    for dh in range(3):                                           # dw folded into weight
        tap = pad_ref[:, dh:dh + HP, :].reshape(bt * HP, 128)
        acc = acc + jnp.dot(tap, w2_ref[dh], preferred_element_type=jnp.float32)
    y2 = jnp.maximum(acc + bias_ref[1:2, 0:N2], 0.0)              # (bt*HP, 128)

    # ---- 2x2/2 maxpool #2 + flatten, folded toward fc1 -----------------------
    # h-pair max per pooled row, lane-merged into a (bt, 512) slab; the w-pair
    # max is a 16-lane shifted max; the stride-2 down-select + (c,h,w) flatten
    # permutation live in fc1's zero-row packing (init-time).
    y2 = y2.reshape(bt, HP, N2)
    for h3 in range(H3):
        hm = jnp.maximum(y2[:, 2 * h3, :], y2[:, 2 * h3 + 1, :])  # (bt, 128)
        flat_ref[:, h3 * N2:(h3 + 1) * N2] = hm
    flat = flat_ref[...]                                          # (bt, 512)
    wmax = jnp.maximum(flat[:, :KFC1], flat[:, C2:])              # (bt, 496)

    # ---- classifier: fc1 -> ReLU -> fc2 -> ReLU -> fc3 (Dropout == identity) --
    h = jnp.dot(wmax, fc1_ref[...], preferred_element_type=jnp.float32)
    h = jnp.maximum(h + bias_ref[2:3, 0:D1], 0.0)
    h = jnp.dot(h, fc23_ref[:, 0:D2], preferred_element_type=jnp.float32)
    h = jnp.maximum(h + bias_ref[3:4, 0:D2], 0.0)
    logits = jnp.dot(h, fc23_ref[:, D2:D2 + NC_PAD],
                     preferred_element_type=jnp.float32) + bias_ref[4:5, 0:NC_PAD]
    o_ref[...] = logits.reshape(bt, 1, NC_PAD)


# ---------------------------- wrapper-side glue ------------------------------
def _conv1_pool_rows(x_nhwc):
    """Row-gathered conv1 input: for pooled output row hp, the 4 padded input rows
    2*hp .. 2*hp+3 flattened over (row, w_pad, cin); K padded 216 -> 256, bf16."""
    b = x_nhwc.shape[0]
    xp = jnp.pad(x_nhwc, ((0, 0), (1, 1), (1, 1), (0, 0)))        # (B, H+2, W+2, C0)
    rows = [xp[:, r:r + 2 * HP:2, :, :] for r in range(4)]        # 4 x (B, HP, W+2, C0)
    r = jnp.stack(rows, axis=2).reshape(b, HP, K1)
    r = jnp.pad(r, ((0, 0), (0, 0), (0, K1_PAD - K1)))
    return r.astype(jnp.bfloat16)


def vgg_forward(x_nchw, p, *, batch_tile=BATCH_TILE):
    assert tuple(x_nchw.shape[1:]) == (C0, H, W), x_nchw.shape
    x = jnp.transpose(x_nchw, (0, 2, 3, 1))                       # NCHW -> NHWC
    b = x.shape[0]
    assert b % batch_tile == 0
    patches = _conv1_pool_rows(x)                                 # (B, HP, 256) bf16

    def resident(shape):
        n = len(shape)
        return pl.BlockSpec(shape, lambda i, n=n: (0,) * n)

    out = pl.pallas_call(
        functools.partial(_vgg_fused_kernel, bt=batch_tile),
        out_shape=jax.ShapeDtypeStruct((b, 1, NC_PAD), jnp.float32),
        grid=(b // batch_tile,),
        in_specs=[
            pl.BlockSpec((batch_tile, HP, K1_PAD), lambda i: (i, 0, 0)),
            resident(p["w1"].shape),
            resident(p["w2"].shape),
            resident(p["fc1"].shape),
            resident(p["fc23"].shape),
            resident(p["bias"].shape),
        ],
        out_specs=pl.BlockSpec((batch_tile, 1, NC_PAD), lambda i: (i, 0, 0)),
        scratch_shapes=[
            pltpu.VMEM((batch_tile, HP + 2, 128), jnp.float32),
            pltpu.VMEM((batch_tile, H3 * N2), jnp.float32),
        ],
        compiler_params=pltpu.CompilerParams(dimension_semantics=("parallel",)),
    )(patches, p["w1"], p["w2"], p["fc1"], p["fc23"], p["bias"])
    return out.reshape(b, NC_PAD)[:, :NC]


# ---- parameters: init mirrors VGG._initialize_weights + one-time host packing ----
def init_params(key):
    ks = jax.random.split(key, 5)
    # conv: W ~ N(0, sqrt(2/(k*k*Cout))), b = 0     (HWIO layout)
    w1 = np.asarray(jax.random.normal(ks[0], (3, 3, C0, C1), jnp.float32)) * math.sqrt(2.0 / (9 * C1))
    w2 = np.asarray(jax.random.normal(ks[1], (3, 3, C1, C2), jnp.float32)) * math.sqrt(2.0 / (9 * C2))
    b1 = np.zeros((C1,), np.float32)
    b2 = np.zeros((C2,), np.float32)
    # linear: W ~ N(0, 0.01), b = 0; fc1 rows generated in PyTorch (c, h, w) order
    fc1 = np.asarray(jax.random.normal(ks[2], (C2 * H3 * W3, D1), jnp.float32)) * 0.01
    fc2 = np.asarray(jax.random.normal(ks[3], (D1, D2), jnp.float32)) * 0.01
    fc3 = np.asarray(jax.random.normal(ks[4], (D2, NC), jnp.float32)) * 0.01
    fb1 = np.zeros((D1,), np.float32)
    fb2 = np.zeros((D2,), np.float32)
    fb3 = np.zeros((NC,), np.float32)

    wc = W + 2
    # conv1 banded weight: row k = r*(W+2)*C0 + wcol*C0 + cin,
    # col = q*(WP*C1) + wp*C1 + cout  (q = pool-window position, pool folded).
    w1b = np.zeros((K1_PAD, 4 * WP * C1), np.float32)
    for qh in range(2):
        for qw in range(2):
            q = 2 * qh + qw
            for wp in range(WP):
                for dh in range(3):
                    for dw in range(3):
                        row0 = (qh + dh) * wc * C0 + (2 * wp + qw + dw) * C0
                        col0 = q * WP * C1 + wp * C1
                        w1b[row0:row0 + C0, col0:col0 + C1] = w1[dh, dw]

    # conv2 banded weights (one per dh): row = wpad*C1 + cin (padded to 128 lanes),
    # col = w*C2 + cout; the dw shift is the block-Toeplitz band.
    w2b = np.zeros((3, 128, N2), np.float32)
    for dh in range(3):
        for dw in range(3):
            for w in range(WP):
                w2b[dh, (w + dw) * C1:(w + dw) * C1 + C1, w * C2:w * C2 + C2] = w2[dh, dw]

    # fc1: permute rows from torch (c,h,w) flatten order into the kernel's pooled
    # lane layout (row l = h3*128 + 2*w3*16 + c); odd-w / unused positions -> zero rows.
    fc1p = np.zeros((KFC1, D1), np.float32)
    for h3 in range(H3):
        for w3 in range(W3):
            for c in range(C2):
                fc1p[h3 * N2 + (2 * w3) * C2 + c] = fc1[c * (H3 * W3) + h3 * W3 + w3]

    # fc2 / fc3 packed side by side (fc3 output padded to 128 lanes).
    fc23 = np.zeros((D1, D2 + NC_PAD), np.float32)
    fc23[:, :D2] = fc2
    fc23[:, D2:D2 + NC] = fc3

    # all biases in one slab (row: conv1-tiled, conv2-tiled, fc1, fc2, fc3).
    bias = np.zeros((5, 256), np.float32)
    bias[0, :4 * WP * C1] = np.tile(b1, 4 * WP)
    bias[1, :N2] = np.tile(b2, WP)
    bias[2, :D1] = fb1
    bias[3, :D2] = fb2
    bias[4, :NC] = fb3

    return {
        "w1": jnp.asarray(w1b, jnp.bfloat16),
        "w2": jnp.asarray(w2b),
        "fc1": jnp.asarray(fc1p),
        "fc23": jnp.asarray(fc23),
        "bias": jnp.asarray(bias),
    }


if __name__ == "__main__":
    key = jax.random.PRNGKey(0)
    kx, kp = jax.random.split(key)
    x = jax.random.normal(kx, (4, C0, H, W), jnp.float32)     # NCHW like PyTorch
    params = init_params(kp)

    out = jax.jit(vgg_forward)(x, params)
    out = jax.block_until_ready(out)

    assert out.shape == (4, NC), out.shape
    assert bool(jnp.all(jnp.isfinite(out)))
    print("KERNEL_OK")
</pallas_src>

<mosaic_0001>
module attributes {stable_mosaic.version = 11 : i64} {
  func.func @_vgg_fused_kernel(%arg0: i32, %arg1: memref<2x8x256xbf16, #tpu.memory_space<vmem>>, %arg2: memref<256x256xbf16, #tpu.memory_space<vmem>>, %arg3: memref<3x128x128xf32, #tpu.memory_space<vmem>>, %arg4: memref<496x64xf32, #tpu.memory_space<vmem>>, %arg5: memref<64x192xf32, #tpu.memory_space<vmem>>, %arg6: memref<5x256xf32, #tpu.memory_space<vmem>>, %arg7: memref<2x1x128xf32, #tpu.memory_space<vmem>>, %arg8: memref<2x10x128xf32, #tpu.memory_space<vmem>>, %arg9: memref<2x512xf32, #tpu.memory_space<vmem>>) attributes {dimension_semantics = [#tpu.dimension_semantics<parallel>], iteration_bounds = array<i64: 2>, scalar_prefetch = 0 : i64, scratch_operands = 2 : i64, tpu.core_type = #tpu.core_type<tc>, window_params = [{transform_indices = @transform_0, window_bounds = array<i64: 2, 8, 256>}, {pipeline_mode = #tpu.pipeline_mode<synchronous>, transform_indices = @transform_1, window_bounds = array<i64: 256, 256>}, {pipeline_mode = #tpu.pipeline_mode<synchronous>, transform_indices = @transform_2, window_bounds = array<i64: 3, 128, 128>}, {pipeline_mode = #tpu.pipeline_mode<synchronous>, transform_indices = @transform_3, window_bounds = array<i64: 496, 64>}, {pipeline_mode = #tpu.pipeline_mode<synchronous>, transform_indices = @transform_4, window_bounds = array<i64: 64, 192>}, {pipeline_mode = #tpu.pipeline_mode<synchronous>, transform_indices = @transform_5, window_bounds = array<i64: 5, 256>}, {transform_indices = @transform_6, window_bounds = array<i64: 2, 1, 128>}]} {
    %c0 = arith.constant 0 : index
    %c0_0 = arith.constant 0 : index
    %c0_1 = arith.constant 0 : index
    %0 = vector.load %arg1[%c0, %c0_0, %c0_1] : memref<2x8x256xbf16, #tpu.memory_space<vmem>>, vector<2x8x256xbf16>
    %1 = vector.shape_cast %0 : vector<2x8x256xbf16> to vector<16x256xbf16>
    %c0_2 = arith.constant 0 : index
    %c0_3 = arith.constant 0 : index
    %2 = vector.load %arg2[%c0_2, %c0_3] : memref<256x256xbf16, #tpu.memory_space<vmem>>, vector<256x256xbf16>
    %cst = arith.constant dense<0.000000e+00> : vector<16x256xf32>
    %3 = tpu.matmul %1, %2, %cst {dimension_numbers = #tpu.dot_dimension_numbers<[1], [0], [0], [1], [0, 0, 1, 1], [], []>} : vector<16x256xbf16>, vector<256x256xbf16>, vector<16x256xf32> -> vector<16x256xf32>
    %c0_4 = arith.constant 0 : index
    %c0_5 = arith.constant 0 : index
    %4 = vector.load %arg6[%c0_4, %c0_5] : memref<5x256xf32, #tpu.memory_space<vmem>>, vector<1x256xf32>
    %5 = vector.broadcast %4 : vector<1x256xf32> to vector<16x256xf32>
    %6 = arith.addf %3, %5 : vector<16x256xf32>
    %cst_6 = arith.constant 0.000000e+00 : f32
    %7 = vector.broadcast %cst_6 : f32 to vector<16x256xf32>
    %8 = arith.maximumf %6, %7 : vector<16x256xf32>
    %9 = vector.extract_strided_slice %8 {offsets = [0, 0], sizes = [16, 64], strides = [1, 1]} : vector<16x256xf32> to vector<16x64xf32>
    %10 = vector.extract_strided_slice %8 {offsets = [0, 64], sizes = [16, 64], strides = [1, 1]} : vector<16x256xf32> to vector<16x64xf32>
    %11 = arith.maximumf %9, %10 : vector<16x64xf32>
    %12 = vector.extract_strided_slice %8 {offsets = [0, 128], sizes = [16, 64], strides = [1, 1]} : vector<16x256xf32> to vector<16x64xf32>
    %13 = vector.extract_strided_slice %8 {offsets = [0, 192], sizes = [16, 64], strides = [1, 1]} : vector<16x256xf32> to vector<16x64xf32>
    %14 = arith.maximumf %12, %13 : vector<16x64xf32>
    %15 = arith.maximumf %11, %14 : vector<16x64xf32>
    %cst_7 = arith.constant 0.000000e+00 : f32
    %16 = vector.broadcast %cst_7 : f32 to vector<2x10x128xf32>
    %c0_8 = arith.constant 0 : index
    %c0_9 = arith.constant 0 : index
    %c0_10 = arith.constant 0 : index
    %17 = vector.load %arg8[%c0_8, %c0_9, %c0_10] : memref<2x10x128xf32, #tpu.memory_space<vmem>>, vector<2x10x128xf32>
    tpu.vector_store %arg8[%c0_8, %c0_9, %c0_10], %16 {strides = array<i32>} : memref<2x10x128xf32, #tpu.memory_space<vmem>>, vector<2x10x128xf32>,
    %18 = vector.shape_cast %15 : vector<16x64xf32> to vector<2x8x64xf32>
    %c0_11 = arith.constant 0 : index
    %c1 = arith.constant 1 : index
    %c8 = arith.constant 8 : index
    %19 = vector.load %arg8[%c0_11, %c1, %c8] : memref<2x10x128xf32, #tpu.memory_space<vmem>>, vector<2x8x64xf32>
    tpu.vector_store %arg8[%c0_11, %c1, %c8], %18 {strides = array<i32>} : memref<2x10x128xf32, #tpu.memory_space<vmem>>, vector<2x8x64xf32>,
    %cst_12 = arith.constant 0.000000e+00 : f32
    %20 = vector.broadcast %cst_12 : f32 to vector<16x128xf32>
    %c0_13 = arith.constant 0 : index
    %c0_14 = arith.constant 0 : index
    %c0_15 = arith.constant 0 : index
    %21 = vector.load %arg8[%c0_13, %c0_14, %c0_15] : memref<2x10x128xf32, #tpu.memory_space<vmem>>, vector<2x8x128xf32>
    %22 = vector.shape_cast %21 : vector<2x8x128xf32> to vector<16x128xf32>
    %c0_16 = arith.constant 0 : index
    %c0_17 = arith.constant 0 : index
    %c0_18 = arith.constant 0 : index
    %23 = vector.load %arg3[%c0_16, %c0_17, %c0_18] : memref<3x128x128xf32, #tpu.memory_space<vmem>>, vector<1x128x128xf32>
    %24 = vector.shape_cast %23 : vector<1x128x128xf32> to vector<128x128xf32>
    %cst_19 = arith.constant dense<0.000000e+00> : vector<16x128xf32>
    %25 = tpu.matmul %22, %24, %cst_19 {dimension_numbers = #tpu.dot_dimension_numbers<[1], [0], [0], [1], [0, 0, 1, 1], [], []>} : vector<16x128xf32>, vector<128x128xf32>, vector<16x128xf32> -> vector<16x128xf32>
    %26 = arith.addf %20, %25 : vector<16x128xf32>
    %c0_20 = arith.constant 0 : index
    %c1_21 = arith.constant 1 : index
    %c0_22 = arith.constant 0 : index
    %27 = vector.load %arg8[%c0_20, %c1_21, %c0_22] : memref<2x10x128xf32, #tpu.memory_space<vmem>>, vector<2x8x128xf32>
    %28 = vector.shape_cast %27 : vector<2x8x128xf32> to vector<16x128xf32>
    %c1_23 = arith.constant 1 : index
    %c0_24 = arith.constant 0 : index
    %c0_25 = arith.constant 0 : index
    %29 = vector.load %arg3[%c1_23, %c0_24, %c0_25] : memref<3x128x128xf32, #tpu.memory_space<vmem>>, vector<1x128x128xf32>
    %30 = vector.shape_cast %29 : vector<1x128x128xf32> to vector<128x128xf32>
    %cst_26 = arith.constant dense<0.000000e+00> : vector<16x128xf32>
    %31 = tpu.matmul %28, %30, %cst_26 {dimension_numbers = #tpu.dot_dimension_numbers<[1], [0], [0], [1], [0, 0, 1, 1], [], []>} : vector<16x128xf32>, vector<128x128xf32>, vector<16x128xf32> -> vector<16x128xf32>
    %32 = arith.addf %26, %31 : vector<16x128xf32>
    %c0_27 = arith.constant 0 : index
    %c2 = arith.constant 2 : index
    %c0_28 = arith.constant 0 : index
    %33 = vector.load %arg8[%c0_27, %c2, %c0_28] : memref<2x10x128xf32, #tpu.memory_space<vmem>>, vector<2x8x128xf32>
    %34 = vector.shape_cast %33 : vector<2x8x128xf32> to vector<16x128xf32>
    %c2_29 = arith.constant 2 : index
    %c0_30 = arith.constant 0 : index
    %c0_31 = arith.constant 0 : index
    %35 = vector.load %arg3[%c2_29, %c0_30, %c0_31] : memref<3x128x128xf32, #tpu.memory_space<vmem>>, vector<1x128x128xf32>
    %36 = vector.shape_cast %35 : vector<1x128x128xf32> to vector<128x128xf32>
    %cst_32 = arith.constant dense<0.000000e+00> : vector<16x128xf32>
    %37 = tpu.matmul %34, %36, %cst_32 {dimension_numbers = #tpu.dot_dimension_numbers<[1], [0], [0], [1], [0, 0, 1, 1], [], []>} : vector<16x128xf32>, vector<128x128xf32>, vector<16x128xf32> -> vector<16x128xf32>
    %38 = arith.addf %32, %37 : vector<16x128xf32>
    %c1_33 = arith.constant 1 : index
    %c0_34 = arith.constant 0 : index
    %39 = vector.load %arg6[%c1_33, %c0_34] : memref<5x256xf32, #tpu.memory_space<vmem>>, vector<1x128xf32>
    %40 = vector.broadcast %39 : vector<1x128xf32> to vector<16x128xf32>
    %41 = arith.addf %38, %40 : vector<16x128xf32>
    %cst_35 = arith.constant 0.000000e+00 : f32
    %42 = vector.broadcast %cst_35 : f32 to vector<16x128xf32>
    %43 = arith.maximumf %41, %42 : vector<16x128xf32>
    %44 = vector.shape_cast %43 : vector<16x128xf32> to vector<2x8x128xf32>
    %45 = vector.extract_strided_slice %44 {offsets = [0, 0, 0], sizes = [2, 1, 128], strides = [1, 1, 1]} : vector<2x8x128xf32> to vector<2x1x128xf32>
    %46 = vector.shape_cast %45 : vector<2x1x128xf32> to vector<2x128xf32>
    %47 = vector.extract_strided_slice %44 {offsets = [0, 1, 0], sizes = [2, 1, 128], strides = [1, 1, 1]} : vector<2x8x128xf32> to vector<2x1x128xf32>
    %48 = vector.shape_cast %47 : vector<2x1x128xf32> to vector<2x128xf32>
    %49 = arith.maximumf %46, %48 : vector<2x128xf32>
    %c0_36 = arith.constant 0 : index
    %c0_37 = arith.constant 0 : index
    %50 = vector.load %arg9[%c0_36, %c0_37] : memref<2x512xf32, #tpu.memory_space<vmem>>, vector<2x128xf32>
    tpu.vector_store %arg9[%c0_36, %c0_37], %49 {strides = array<i32>} : memref<2x512xf32, #tpu.memory_space<vmem>>, vector<2x128xf32>,
    %51 = vector.extract_strided_slice %44 {offsets = [0, 2, 0], sizes = [2, 1, 128], strides = [1, 1, 1]} : vector<2x8x128xf32> to vector<2x1x128xf32>
    %52 = vector.shape_cast %51 : vector<2x1x128xf32> to vector<2x128xf32>
    %53 = vector.extract_strided_slice %44 {offsets = [0, 3, 0], sizes = [2, 1, 128], strides = [1, 1, 1]} : vector<2x8x128xf32> to vector<2x1x128xf32>
    %54 = vector.shape_cast %53 : vector<2x1x128xf32> to vector<2x128xf32>
    %55 = arith.maximumf %52, %54 : vector<2x128xf32>
    %c0_38 = arith.constant 0 : index
    %c128 = arith.constant 128 : index
    %56 = vector.load %arg9[%c0_38, %c128] : memref<2x512xf32, #tpu.memory_space<vmem>>, vector<2x128xf32>
    tpu.vector_store %arg9[%c0_38, %c128], %55 {strides = array<i32>} : memref<2x512xf32, #tpu.memory_space<vmem>>, vector<2x128xf32>,
    %57 = vector.extract_strided_slice %44 {offsets = [0, 4, 0], sizes = [2, 1, 128], strides = [1, 1, 1]} : vector<2x8x128xf32> to vector<2x1x128xf32>
    %58 = vector.shape_cast %57 : vector<2x1x128xf32> to vector<2x128xf32>
    %59 = vector.extract_strided_slice %44 {offsets = [0, 5, 0], sizes = [2, 1, 128], strides = [1, 1, 1]} : vector<2x8x128xf32> to vector<2x1x128xf32>
    %60 = vector.shape_cast %59 : vector<2x1x128xf32> to vector<2x128xf32>
    %61 = arith.maximumf %58, %60 : vector<2x128xf32>
    %c0_39 = arith.constant 0 : index
    %c256 = arith.constant 256 : index
    %62 = vector.load %arg9[%c0_39, %c256] : memref<2x512xf32, #tpu.memory_space<vmem>>, vector<2x128xf32>
    tpu.vector_store %arg9[%c0_39, %c256], %61 {strides = array<i32>} : memref<2x512xf32, #tpu.memory_space<vmem>>, vector<2x128xf32>,
    %63 = vector.extract_strided_slice %44 {offsets = [0, 6, 0], sizes = [2, 1, 128], strides = [1, 1, 1]} : vector<2x8x128xf32> to vector<2x1x128xf32>
    %64 = vector.shape_cast %63 : vector<2x1x128xf32> to vector<2x128xf32>
    %65 = vector.extract_strided_slice %44 {offsets = [0, 7, 0], sizes = [2, 1, 128], strides = [1, 1, 1]} : vector<2x8x128xf32> to vector<2x1x128xf32>
    %66 = vector.shape_cast %65 : vector<2x1x128xf32> to vector<2x128xf32>
    %67 = arith.maximumf %64, %66 : vector<2x128xf32>
    %c0_40 = arith.constant 0 : index
    %c384 = arith.constant 384 : index
    %68 = vector.load %arg9[%c0_40, %c384] : memref<2x512xf32, #tpu.memory_space<vmem>>, vector<2x128xf32>
    tpu.vector_store %arg9[%c0_40, %c384], %67 {strides = array<i32>} : memref<2x512xf32, #tpu.memory_space<vmem>>, vector<2x128xf32>,
    %c0_41 = arith.constant 0 : index
    %c0_42 = arith.constant 0 : index
    %69 = vector.load %arg9[%c0_41, %c0_42] : memref<2x512xf32, #tpu.memory_space<vmem>>, vector<2x512xf32>
    %70 = vector.extract_strided_slice %69 {offsets = [0, 0], sizes = [2, 496], strides = [1, 1]} : vector<2x512xf32> to vector<2x496xf32>
    %71 = vector.extract_strided_slice %69 {offsets = [0, 16], sizes = [2, 496], strides = [1, 1]} : vector<2x512xf32> to vector<2x496xf32>
    %72 = arith.maximumf %70, %71 : vector<2x496xf32>
    %c0_43 = arith.constant 0 : index
    %c0_44 = arith.constant 0 : index
    %73 = vector.load %arg4[%c0_43, %c0_44] : memref<496x64xf32, #tpu.memory_space<vmem>>, vector<496x64xf32>
    %cst_45 = arith.constant dense<0.000000e+00> : vector<2x64xf32>
    %74 = tpu.matmul %72, %73, %cst_45 {dimension_numbers = #tpu.dot_dimension_numbers<[1], [0], [0], [1], [0, 0, 1, 1], [], []>} : vector<2x496xf32>, vector<496x64xf32>, vector<2x64xf32> -> vector<2x64xf32>
    %c2_46 = arith.constant 2 : index
    %c0_47 = arith.constant 0 : index
    %75 = vector.load %arg6[%c2_46, %c0_47] : memref<5x256xf32, #tpu.memory_space<vmem>>, vector<1x64xf32>
    %76 = vector.broadcast %75 : vector<1x64xf32> to vector<2x64xf32>
    %77 = arith.addf %74, %76 : vector<2x64xf32>
    %cst_48 = arith.constant 0.000000e+00 : f32
    %78 = vector.broadcast %cst_48 : f32 to vector<2x64xf32>
    %79 = arith.maximumf %77, %78 : vector<2x64xf32>
    %c0_49 = arith.constant 0 : index
    %c0_50 = arith.constant 0 : index
    %80 = vector.load %arg5[%c0_49, %c0_50] : memref<64x192xf32, #tpu.memory_space<vmem>>, vector<64x64xf32>
    %cst_51 = arith.constant dense<0.000000e+00> : vector<2x64xf32>
    %81 = tpu.matmul %79, %80, %cst_51 {dimension_numbers = #tpu.dot_dimension_numbers<[1], [0], [0], [1], [0, 0, 1, 1], [], []>} : vector<2x64xf32>, vector<64x64xf32>, vector<2x64xf32> -> vector<2x64xf32>
    %c3 = arith.constant 3 : index
    %c0_52 = arith.constant 0 : index
    %82 = vector.load %arg6[%c3, %c0_52] : memref<5x256xf32, #tpu.memory_space<vmem>>, vector<1x64xf32>
    %83 = vector.broadcast %82 : vector<1x64xf32> to vector<2x64xf32>
    %84 = arith.addf %81, %83 : vector<2x64xf32>
    %cst_53 = arith.constant 0.000000e+00 : f32
    %85 = vector.broadcast %cst_53 : f32 to vector<2x64xf32>
    %86 = arith.maximumf %84, %85 : vector<2x64xf32>
    %c0_54 = arith.constant 0 : index
    %c64 = arith.constant 64 : index
    %87 = vector.load %arg5[%c0_54, %c64] : memref<64x192xf32, #tpu.memory_space<vmem>>, vector<64x128xf32>
    %cst_55 = arith.constant dense<0.000000e+00> : vector<2x128xf32>
    %88 = tpu.matmul %86, %87, %cst_55 {dimension_numbers = #tpu.dot_dimension_numbers<[1], [0], [0], [1], [0, 0, 1, 1], [], []>} : vector<2x64xf32>, vector<64x128xf32>, vector<2x128xf32> -> vector<2x128xf32>
    %c4 = arith.constant 4 : index
    %c0_56 = arith.constant 0 : index
    %89 = vector.load %arg6[%c4, %c0_56] : memref<5x256xf32, #tpu.memory_space<vmem>>, vector<1x128xf32>
    %90 = vector.broadcast %89 : vector<1x128xf32> to vector<2x128xf32>
    %91 = arith.addf %88, %90 : vector<2x128xf32>
    %92 = vector.shape_cast %91 : vector<2x128xf32> to vector<2x1x128xf32>
    %c0_57 = arith.constant 0 : index
    %c0_58 = arith.constant 0 : index
    %c0_59 = arith.constant 0 : index
    %93 = vector.load %arg7[%c0_57, %c0_58, %c0_59] : memref<2x1x128xf32, #tpu.memory_space<vmem>>, vector<2x1x128xf32>
    tpu.vector_store %arg7[%c0_57, %c0_58, %c0_59], %92 {strides = array<i32>} : memref<2x1x128xf32, #tpu.memory_space<vmem>>, vector<2x1x128xf32>,
    return
  }
  func.func @transform_0(%arg0: i32) -> (i32, i32, i32) {
    %c0_i32 = arith.constant 0 : i32
    %c0_i32_0 = arith.constant 0 : i32
    %c0_i32_1 = arith.constant 0 : i32
    return %arg0, %c0_i32, %c0_i32_0 : i32, i32, i32
  }
  func.func @transform_1(%arg0: i32) -> (i32, i32) {
    %c0_i32 = arith.constant 0 : i32
    %c0_i32_0 = arith.constant 0 : i32
    %c0_i32_1 = arith.constant 0 : i32
    return %c0_i32, %c0_i32_0 : i32, i32
  }
  func.func @transform_2(%arg0: i32) -> (i32, i32, i32) {
    %c0_i32 = arith.constant 0 : i32
    %c0_i32_0 = arith.constant 0 : i32
    %c0_i32_1 = arith.constant 0 : i32
    %c0_i32_2 = arith.constant 0 : i32
    return %c0_i32, %c0_i32_0, %c0_i32_1 : i32, i32, i32
  }
  func.func @transform_3(%arg0: i32) -> (i32, i32) {
    %c0_i32 = arith.constant 0 : i32
    %c0_i32_0 = arith.constant 0 : i32
    %c0_i32_1 = arith.constant 0 : i32
    return %c0_i32, %c0_i32_0 : i32, i32
  }
  func.func @transform_4(%arg0: i32) -> (i32, i32) {
    %c0_i32 = arith.constant 0 : i32
    %c0_i32_0 = arith.constant 0 : i32
    %c0_i32_1 = arith.constant 0 : i32
    return %c0_i32, %c0_i32_0 : i32, i32
  }
  func.func @transform_5(%arg0: i32) -> (i32, i32) {
    %c0_i32 = arith.constant 0 : i32
    %c0_i32_0 = arith.constant 0 : i32
    %c0_i32_1 = arith.constant 0 : i32
    return %c0_i32, %c0_i32_0 : i32, i32
  }
  func.func @transform_6(%arg0: i32) -> (i32, i32, i32) {
    %c0_i32 = arith.constant 0 : i32
    %c0_i32_0 = arith.constant 0 : i32
    %c0_i32_1 = arith.constant 0 : i32
    return %arg0, %c0_i32, %c0_i32_0 : i32, i32, i32
  }
}

</mosaic_0001>

<llo_original>
// kernel: vgg_forward.1
$region0: #{vgg_forward.1}
  #allocation0 [shape = 'u32[]', space=smem, size = 0x4, offset = 0x4, fixed_abs, tag = 'smem constant byte address 0x4 - core index']
  #allocation1 [shape = 'u32[144,128]{1,0:T(1,128)}', space=vmem, size = 0x12000, scoped, tag = 'internal scratch']
  #allocation2 [shape = 'f32[2,10,128]{2,1,0:T(8,128)}', space=vmem, size = 0x4000, scoped, tag = 'scratch operand']
  #allocation3 [shape = 'f32[2,512]{1,0:T(2,128)}', space=vmem, size = 0x1000, scoped, tag = 'scratch operand']
  %s0 = inlined_call_operand.vmem [shape: bf16[4,8,256], index: 0, kind: input, shape index: {}]
  %s1 = inlined_call_operand.vmem [shape: bf16[256,256], index: 1, kind: input, shape index: {}]
  %s2 = inlined_call_operand.vmem [shape: f32[3,128,128], index: 2, kind: input, shape index: {}]
  %s3 = inlined_call_operand.vmem [shape: f32[496,64], index: 3, kind: input, shape index: {}]
  %s4 = inlined_call_operand.vmem [shape: f32[64,192], index: 4, kind: input, shape index: {}]
  %s5 = inlined_call_operand.vmem [shape: f32[5,256], index: 5, kind: input, shape index: {}]
  %s6 = inlined_call_operand.hbm [shape: f32[4,1,128], index: 6, kind: output, shape index: {}]
  %s7 = sld [smem:[#allocation0]]
  $region57: #{vgg_forward.1} parent=0
    _
  %s9 = ssub.s32 1, %s7
  %s10 = scalar_select 0, %s9, %s7
  $region1: #{vgg_forward.1} parent=0
    #allocation4 [shape = 'u8[2048]{0}', space=vmem, size = 0x800, scoped, tag = 'output window, operand 0']
    #allocation5 [shape = 's32[2]{0}', space=sflag, size = 0x8, scoped, tag = 'scoped memory for vgg_forward.1']
    %11 = vsyncpa [#allocation5], 0
    %s12 = scalar_lea.sflag [#allocation5], 1
    %13 = vsyncpa %s12, 0
    loop: start=0, step=1, limit=4
    $region2: #{vgg_forward.1} parent=1 // loop_pre_header
      _
    $region3: #{vgg_forward.1} parent=1 // loop_header
      %s15 = sphi 0, %s19
      %p16 = scmp.ge.s32.totalorder %s15, 4
      %s25 = sphi 0, %s27
      %s28 = sphi 0, %s25
      %s29 = sphi 0, %s28
      %s45 = sphi 0, %s29
      %s49 = sphi 0, %s49
      %s51 = sphi 0, %s49
      %s52 = sphi 0, %s51
      %s66 = sphi 0, %s52
      %s70 = sphi 0, %s70
      %s72 = sphi 0, %s70
      %s73 = sphi 0, %s72
      %s87 = sphi 0, %s73
      %s91 = sphi 0, %s91
      %s93 = sphi 0, %s91
      %s94 = sphi 0, %s93
      %s108 = sphi 0, %s94
      %s112 = sphi 0, %s112
      %s114 = sphi 0, %s112
      %s115 = sphi 0, %s114
      %s129 = sphi 0, %s115
      %s133 = sphi 0, %s133
      %s135 = sphi 0, %s133
      %s136 = sphi 0, %s135
      %s150 = sphi 0, %s136
      %s156 = sphi 0, %s158
      %s159 = sphi 0, %s156
      %s160 = sphi 0, %s159
      %s176 = sphi 0, %s160
    $region4: #{vgg_forward.1} parent=1 // loop_header_branch
      %18 = sbr.rel (%p16) target = $region8
    $region5: #{vgg_forward.1} parent=1 // loop_body
      %s20 = ssub.s32 %s15, 1
      %s21 = ssub.s32 %s15, 2
      %s22 = sadd.s32 %s15, 1
      %s23 = ssub.s32 %s15, %s22
      %p24 = scmp.eq.s32.totalorder %s23, 0
      %s26 = sadd.s32 %s25, 1
      %s27 = scalar_select %p24, %s25, %s26
      %p30 = pneg %p24
      %p31 = scmp.eq.s32.totalorder %s15, 1
      %p32 = por %p30, %p31
      %p33 = scmp.ne.s32.totalorder %s25, %s28
      %p34 = scmp.eq.s32.totalorder %s15, 0
      %p35 = por %p33, %p34
      %p36 = scmp.ne.s32.totalorder %s25, %s28
      %p37 = scmp.eq.s32.totalorder %s20, 1
      %p38 = por %p36, %p37
      %p39 = scmp.ne.s32.totalorder %s28, %s29
      %p40 = scmp.eq.s32.totalorder %s20, 0
      %p41 = por %p39, %p40
      %p42 = scmp.ne.s32.totalorder %s28, %s29
      %p43 = scmp.eq.s32.totalorder %s21, 1
      %p44 = por %p42, %p43
      %p46 = scmp.ne.s32.totalorder %s29, %s45
      %p47 = scmp.eq.s32.totalorder %s21, 0
      %p48 = por %p46, %p47
      %s50 = sadd.s32 %s49, 1
      %p53 = scmp.eq.s32.totalorder %s15, 1
      %p54 = scmp.ne.s32.totalorder %s49, %s51
      %p55 = scmp.eq.s32.totalorder %s15, 0
      %p56 = por %p54, %p55
      %p57 = scmp.ne.s32.totalorder %s49, %s51
      %p58 = scmp.eq.s32.totalorder %s20, 1
      %p59 = por %p57, %p58
      %p60 = scmp.ne.s32.totalorder %s51, %s52
      %p61 = scmp.eq.s32.totalorder %s20, 0
      %p62 = por %p60, %p61
      %p63 = scmp.ne.s32.totalorder %s51, %s52
      %p64 = scmp.eq.s32.totalorder %s21, 1
      %p65 = por %p63, %p64
      %p67 = scmp.ne.s32.totalorder %s52, %s66
      %p68 = scmp.eq.s32.totalorder %s21, 0
      %p69 = por %p67, %p68
      %s71 = sadd.s32 %s70, 1
      %p74 = scmp.eq.s32.totalorder %s15, 1
      %p75 = scmp.ne.s32.totalorder %s70, %s72
      %p76 = scmp.eq.s32.totalorder %s15, 0
      %p77 = por %p75, %p76
      %p78 = scmp.ne.s32.totalorder %s70, %s72
      %p79 = scmp.eq.s32.totalorder %s20, 1
      %p80 = por %p78, %p79
      %p81 = scmp.ne.s32.totalorder %s72, %s73
      %p82 = scmp.eq.s32.totalorder %s20, 0
      %p83 = por %p81, %p82
      %p84 = scmp.ne.s32.totalorder %s72, %s73
      %p85 = scmp.eq.s32.totalorder %s21, 1
      %p86 = por %p84, %p85
      %p88 = scmp.ne.s32.totalorder %s73, %s87
      %p89 = scmp.eq.s32.totalorder %s21, 0
      %p90 = por %p88, %p89
      %s92 = sadd.s32 %s91, 1
      %p95 = scmp.eq.s32.totalorder %s15, 1
      %p96 = scmp.ne.s32.totalorder %s91, %s93
      %p97 = scmp.eq.s32.totalorder %s15, 0
      %p98 = por %p96, %p97
      %p99 = scmp.ne.s32.totalorder %s91, %s93
      %p100 = scmp.eq.s32.totalorder %s20, 1
      %p101 = por %p99, %p100
      %p102 = scmp.ne.s32.totalorder %s93, %s94
      %p103 = scmp.eq.s32.totalorder %s20, 0
      %p104 = por %p102, %p103
      %p105 = scmp.ne.s32.totalorder %s93, %s94
      %p106 = scmp.eq.s32.totalorder %s21, 1
      %p107 = por %p105, %p106
      %p109 = scmp.ne.s32.totalorder %s94, %s108
      %p110 = scmp.eq.s32.totalorder %s21, 0
      %p111 = por %p109, %p110
      %s113 = sadd.s32 %s112, 1
      %p116 = scmp.eq.s32.totalorder %s15, 1
      %p117 = scmp.ne.s32.totalorder %s112, %s114
      %p118 = scmp.eq.s32.totalorder %s15, 0
      %p119 = por %p117, %p118
      %p120 = scmp.ne.s32.totalorder %s112, %s114
      %p121 = scmp.eq.s32.totalorder %s20, 1
      %p122 = por %p120, %p121
      %p123 = scmp.ne.s32.totalorder %s114, %s115
      %p124 = scmp.eq.s32.totalorder %s20, 0
      %p125 = por %p123, %p124
      %p126 = scmp.ne.s32.totalorder %s114, %s115
      %p127 = scmp.eq.s32.totalorder %s21, 1
      %p128 = por %p126, %p127
      %p130 = scmp.ne.s32.totalorder %s115, %s129
      %p131 = scmp.eq.s32.totalorder %s21, 0
      %p132 = por %p130, %p131
      %s134 = sadd.s32 %s133, 1
      %p137 = scmp.eq.s32.totalorder %s15, 1
      %p138 = scmp.ne.s32.totalorder %s133, %s135
      %p139 = scmp.eq.s32.totalorder %s15, 0
      %p140 = por %p138, %p139
      %p141 = scmp.ne.s32.totalorder %s133, %s135
      %p142 = scmp.eq.s32.totalorder %s20, 1
      %p143 = por %p141, %p142
      %p144 = scmp.ne.s32.totalorder %s135, %s136
      %p145 = scmp.eq.s32.totalorder %s20, 0
      %p146 = por %p144, %p145
      %p147 = scmp.ne.s32.totalorder %s135, %s136
      %p148 = scmp.eq.s32.totalorder %s21, 1
      %p149 = por %p147, %p148
      %p151 = scmp.ne.s32.totalorder %s136, %s150
      %p152 = scmp.eq.s32.totalorder %s21, 0
      %p153 = por %p151, %p152
      %s154 = ssub.s32 %s15, %s22
      %p155 = scmp.eq.s32.totalorder %s154, 0
      %s157 = sadd.s32 %s156, 1
      %s158 = scalar_select %p155, %s156, %s157
      %p161 = pneg %p155
      %p162 = scmp.eq.s32.totalorder %s15, 1
      %p163 = por %p161, %p162
      %p164 = scmp.ne.s32.totalorder %s156, %s159
      %p165 = scmp.eq.s32.totalorder %s15, 0
      %p166 = por %p164, %p165
      %p167 = scmp.ne.s32.totalorder %s156, %s159
      %p168 = scmp.eq.s32.totalorder %s20, 1
      %p169 = por %p167, %p168
      %p170 = scmp.ne.s32.totalorder %s159, %s160
      %p171 = scmp.eq.s32.totalorder %s20, 0
      %p172 = por %p170, %p171
      %p173 = scmp.ne.s32.totalorder %s159, %s160
      %p174 = scmp.eq.s32.totalorder %s21, 1
      %p175 = por %p173, %p174
      %p177 = scmp.ne.s32.totalorder %s160, %s176
      %p178 = scmp.eq.s32.totalorder %s21, 0
      %p179 = por %p177, %p178
      %p180 = scmp.le.s32.totalorder 1, %s15
      %p181 = scmp.lt.s32.totalorder %s15, 3
      %p182 = pnand %p180, %p181
      %p183 = pneg %p182
      // Predicated region
      $region9: #{vgg_forward.1} parent=5 // pred_check
        _
      $region10: #{vgg_forward.1} parent=5 // pred_check_branch
        %185 = sbr.rel (%p182) target = $region12
      $region11: #{vgg_forward.1} parent=5 // pred_region
        %s186 = ssub.s32 %s15, 1
        // Predicated region
        $region13: #{vgg_forward.1} parent=11 // pred_check
          %p187 = pneg %p62
        $region14: #{vgg_forward.1} parent=11 // pred_check_branch
          %189 = sbr.rel (%p187) target = $region16
        $region15: #{vgg_forward.1} parent=11 // pred_region
          _
        $region16: #{vgg_forward.1} parent=11 // pred_fallthru
          _
        // Predicated region
        $region17: #{vgg_forward.1} parent=11 // pred_check
          %p190 = pneg %p83
        $region18: #{vgg_forward.1} parent=11 // pred_check_branch
          %192 = sbr.rel (%p190) target = $region20
        $region19: #{vgg_forward.1} parent=11 // pred_region
          _
        $region20: #{vgg_forward.1} parent=11 // pred_fallthru
          _
        // Predicated region
        $region21: #{vgg_forward.1} parent=11 // pred_check
          %p193 = pneg %p104
        $region22: #{vgg_forward.1} parent=11 // pred_check_branch
          %195 = sbr.rel (%p193) target = $region24
        $region23: #{vgg_forward.1} parent=11 // pred_region
          _
        $region24: #{vgg_forward.1} parent=11 // pred_fallthru
          _
        // Predicated region
        $region25: #{vgg_forward.1} parent=11 // pred_check
          %p196 = pneg %p125
        $region26: #{vgg_forward.1} parent=11 // pred_check_branch
          %198 = sbr.rel (%p196) target = $region28
        $region27: #{vgg_forward.1} parent=11 // pred_region
          _
        $region28: #{vgg_forward.1} parent=11 // pred_fallthru
          _
        // Predicated region
        $region29: #{vgg_forward.1} parent=11 // pred_check
          %p199 = pneg %p146
        $region30: #{vgg_forward.1} parent=11 // pred_check_branch
          %201 = sbr.rel (%p199) target = $region32
        $region31: #{vgg_forward.1} parent=11 // pred_region
          _
        $region32: #{vgg_forward.1} parent=11 // pred_fallthru
          _
      $region12: #{vgg_forward.1} parent=5 // pred_fallthru
        _
      %p202 = scmp.lt.s32.totalorder %s15, 2
      // Predicated region
      $region33: #{vgg_forward.1} parent=5 // pred_check
        %p203 = pneg %p202
      $region34: #{vgg_forward.1} parent=5 // pred_check_branch
        %205 = sbr.rel (%p203) target = $region36
      $region35: #{vgg_forward.1} parent=5 // pred_region
        // Predicated region
        $region37: #{vgg_forward.1} parent=35 // pred_check
          %p206 = pneg %p35
        $region38: #{vgg_forward.1} parent=35 // pred_check_branch
          %208 = sbr.rel (%p206) target = $region40
        $region39: #{vgg_forward.1} parent=35 // pred_region
          %s209 = smul.u32 2, %s15
          %p210 = scmp.lt.s32.totalorder %s209, 3
          %s211 = scalar_select %p210, %s209, 3
          %s212 = smul.addr %s211, 2
          %s213 = smul.addr %s212, 4
          %s214 = scalar_lea.vmem %s0, %s213
          %s215 = smul.u32 2, %s15
        $region40: #{vgg_forward.1} parent=35 // pred_fallthru
          _
      $region36: #{vgg_forward.1} parent=5 // pred_fallthru
        _
      %p216 = scmp.le.s32.totalorder 1, %s15
      %p217 = scmp.lt.s32.totalorder %s15, 3
      %p218 = pnand %p216, %p217
      %p219 = pneg %p218
      // Predicated region
      $region41: #{vgg_forward.1} parent=5 // pred_check
        _
      $region42: #{vgg_forward.1} parent=5 // pred_check_branch
        %221 = sbr.rel (%p218) target = $region44
      $region43: #{vgg_forward.1} parent=5 // pred_region
        %s222 = ssub.s32 %s15, 1
        %s223 = smul.u32 2, %s20
        %p224 = scmp.lt.s32.totalorder %s223, 3
        %s225 = scalar_select %p224, %s223, 3
        %s226 = smul.addr %s225, 2
        %s227 = smul.addr %s226, 4
        %s228 = scalar_lea.vmem %s0, %s227
        %p229 = pneg %p41
        %p230 = pneg %p38
        %p231 = pneg %p62
        %p232 = pneg %p59
        %p233 = pneg %p83
        %p234 = pneg %p80
        %p235 = pneg %p104
        %p236 = pneg %p101
        %p237 = pneg %p125
        %p238 = pneg %p122
        %p239 = pneg %p146
        %p240 = pneg %p143
        %p241 = pneg %p172
        %p242 = pneg %p169
        %s243 = sand.u32 %s159, 1
        %s244 = scalar_lea.sflag [#allocation5], %s243
        %s245 = sand.u32 %s159, 1
        %s246 = smul.addr %s245, 2
        %s247 = scalar_lea.vmem [#allocation4], %s246
        %s248 = smul.u32 2, %s20
        %p249 = scmp.lt.s32.totalorder %s248, 3
        %s250 = scalar_select %p249, %s248, 3
        %s251 = smul.addr %s250, 2
        %s252 = smul.addr %s251, 4
        %s253 = scalar_lea.vmem %s0, %s252
        %s254 = smul.u32 2, %s20
        %s255 = smul.u32 2, %s20
        %v256 = vld [vmem:[%s253] sm:$0xff]
        %v257 = vld [vmem:[%s253 + $0x8] sm:$0xff]
        %v258 = vld [vmem:[%s1] sm:$0xff]
        %v259 = vld [vmem:[%s1 + $0x8] sm:$0xff]
        %v260 = vld [vmem:[%s1 + $0x10] sm:$0xff]
        %v261 = vld [vmem:[%s1 + $0x18] sm:$0xff]
        %v262 = vld [vmem:[%s1 + $0x20] sm:$0xff]
        %v263 = vld [vmem:[%s1 + $0x28] sm:$0xff]
        %v264 = vld [vmem:[%s1 + $0x30] sm:$0xff]
        %v265 = vld [vmem:[%s1 + $0x38] sm:$0xff]
        %v266 = vld [vmem:[%s1 + $0x40] sm:$0xff]
        %v267 = vld [vmem:[%s1 + $0x48] sm:$0xff]
        %v268 = vld [vmem:[%s1 + $0x50] sm:$0xff]
        %v269 = vld [vmem:[%s1 + $0x58] sm:$0xff]
        %v270 = vld [vmem:[%s1 + $0x60] sm:$0xff]
        %v271 = vld [vmem:[%s1 + $0x68] sm:$0xff]
        %v272 = vld [vmem:[%s1 + $0x70] sm:$0xff]
        %v273 = vld [vmem:[%s1 + $0x78] sm:$0xff]
        %v274 = vld [vmem:[%s1 + $0x80] sm:$0xff]
        %v275 = vld [vmem:[%s1 + $0x88] sm:$0xff]
        %v276 = vld [vmem:[%s1 + $0x90] sm:$0xff]
        %v277 = vld [vmem:[%s1 + $0x98] sm:$0xff]
        %v278 = vld [vmem:[%s1 + $0xa0] sm:$0xff]
        %v279 = vld [vmem:[%s1 + $0xa8] sm:$0xff]
        %v280 = vld [vmem:[%s1 + $0xb0] sm:$0xff]
        %v281 = vld [vmem:[%s1 + $0xb8] sm:$0xff]
        %v282 = vld [vmem:[%s1 + $0xc0] sm:$0xff]
        %v283 = vld [vmem:[%s1 + $0xc8] sm:$0xff]
        %v284 = vld [vmem:[%s1 + $0xd0] sm:$0xff]
        %v285 = vld [vmem:[%s1 + $0xd8] sm:$0xff]
        %v286 = vld [vmem:[%s1 + $0xe0] sm:$0xff]
        %v287 = vld [vmem:[%s1 + $0xe8] sm:$0xff]
        %v288 = vld [vmem:[%s1 + $0xf0] sm:$0xff]
        %v289 = vld [vmem:[%s1 + $0xf8] sm:$0xff]
        %v290 = vld [vmem:[%s5] ss:$8 sm:$0x3]
        %v292 = vlaneseq
        %v293 = vshrl.u32 %v292, 7
        %v294 = vsub.s32 0, %v293
        %v295 = vrot.slane %v290, %v294
        %v296 = vlaneseq
        %v297 = vshrl.u32 %v296, 7
        %v298 = vsub.s32 1, %v297
        %v299 = vrot.slane %v290, %v298
        %v304 = vunpack.c.l.b16 %v256
        %v305 = vunpack.c.h.b16 %v256
        %v306 = vunpack.c.l.b16 %v257
        %v307 = vunpack.c.h.b16 %v257
        %v308 = vpack.c.b16 %v306, %v304
        %v309 = vpack.c.b16 %v307, %v305
        %v344 = vunpack.c.l.b16 %v258
        %v345 = vunpack.c.h.b16 %v258
        %v346 = vunpack.c.l.b16 %v259
        %v347 = vunpack.c.h.b16 %v259
        %v348 = vunpack.c.l.b16 %v260
        %v349 = vunpack.c.h.b16 %v260
        %v350 = vunpack.c.l.b16 %v261
        %v351 = vunpack.c.h.b16 %v261
        %v352 = vunpack.c.l.b16 %v262
        %v353 = vunpack.c.h.b16 %v262
        %v354 = vunpack.c.l.b16 %v263
        %v355 = vunpack.c.h.b16 %v263
        %v356 = vunpack.c.l.b16 %v264
        %v357 = vunpack.c.h.b16 %v264
        %v358 = vunpack.c.l.b16 %v265
        %v359 = vunpack.c.h.b16 %v265
        %v360 = vunpack.c.l.b16 %v266
        %v361 = vunpack.c.h.b16 %v266
        %v362 = vunpack.c.l.b16 %v267
        %v363 = vunpack.c.h.b16 %v267
        %v364 = vunpack.c.l.b16 %v268
        %v365 = vunpack.c.h.b16 %v268
        %v366 = vunpack.c.l.b16 %v269
        %v367 = vunpack.c.h.b16 %v269
        %v368 = vunpack.c.l.b16 %v270
        %v369 = vunpack.c.h.b16 %v270
        %v370 = vunpack.c.l.b16 %v271
        %v371 = vunpack.c.h.b16 %v271
        %v372 = vunpack.c.l.b16 %v272
        %v373 = vunpack.c.h.b16 %v272
        %v374 = vunpack.c.l.b16 %v273
        %v375 = vunpack.c.h.b16 %v273
        %v376 = vunpack.c.l.b16 %v274
        %v377 = vunpack.c.h.b16 %v274
        %v378 = vunpack.c.l.b16 %v275
        %v379 = vunpack.c.h.b16 %v275
        %v380 = vunpack.c.l.b16 %v276
        %v381 = vunpack.c.h.b16 %v276
        %v382 = vunpack.c.l.b16 %v277
        %v383 = vunpack.c.h.b16 %v277
        %v384 = vunpack.c.l.b16 %v278
        %v385 = vunpack.c.h.b16 %v278
        %v386 = vunpack.c.l.b16 %v279
        %v387 = vunpack.c.h.b16 %v279
        %v388 = vunpack.c.l.b16 %v280
        %v389 = vunpack.c.h.b16 %v280
        %v390 = vunpack.c.l.b16 %v281
        %v391 = vunpack.c.h.b16 %v281
        %v392 = vunpack.c.l.b16 %v282
        %v393 = vunpack.c.h.b16 %v282
        %v394 = vunpack.c.l.b16 %v283
        %v395 = vunpack.c.h.b16 %v283
        %v396 = vunpack.c.l.b16 %v284
        %v397 = vunpack.c.h.b16 %v284
        %v398 = vunpack.c.l.b16 %v285
        %v399 = vunpack.c.h.b16 %v285
        %v400 = vunpack.c.l.b16 %v286
        %v401 = vunpack.c.h.b16 %v286
        %v402 = vunpack.c.l.b16 %v287
        %v403 = vunpack.c.h.b16 %v287
        %v404 = vunpack.c.l.b16 %v288
        %v405 = vunpack.c.h.b16 %v288
        %v406 = vunpack.c.l.b16 %v289
        %v407 = vunpack.c.h.b16 %v289
        %v408 = vpack.c.b16 %v346, %v344
        %v409 = vpack.c.b16 %v347, %v345
        %v410 = vpack.c.b16 %v350, %v348
        %v411 = vpack.c.b16 %v351, %v349
        %v412 = vpack.c.b16 %v354, %v352
        %v413 = vpack.c.b16 %v355, %v353
        %v414 = vpack.c.b16 %v358, %v356
        %v415 = vpack.c.b16 %v359, %v357
        %v416 = vpack.c.b16 %v362, %v360
        %v417 = vpack.c.b16 %v363, %v361
        %v418 = vpack.c.b16 %v366, %v364
        %v419 = vpack.c.b16 %v367, %v365
        %v420 = vpack.c.b16 %v370, %v368
        %v421 = vpack.c.b16 %v371, %v369
        %v422 = vpack.c.b16 %v374, %v372
        %v423 = vpack.c.b16 %v375, %v373
        %v424 = vpack.c.b16 %v378, %v376
        %v425 = vpack.c.b16 %v379, %v377
        %v426 = vpack.c.b16 %v382, %v380
        %v427 = vpack.c.b16 %v383, %v381
        %v428 = vpack.c.b16 %v386, %v384
        %v429 = vpack.c.b16 %v387, %v385
        %v430 = vpack.c.b16 %v390, %v388
        %v431 = vpack.c.b16 %v391, %v389
        %v432 = vpack.c.b16 %v394, %v392
        %v433 = vpack.c.b16 %v395, %v393
        %v434 = vpack.c.b16 %v398, %v396
        %v435 = vpack.c.b16 %v399, %v397
        %v436 = vpack.c.b16 %v402, %v400
        %v437 = vpack.c.b16 %v403, %v401
        %v438 = vpack.c.b16 %v406, %v404
        %v439 = vpack.c.b16 %v407, %v405
        %472 = vmatprep.subr.bf16.mxu0 %v423
        %473 = vmatpush1.bf16.msra.mxu0 %v422
        %474 = vmatprep.subr.bf16.mxu0 %v421
        %475 = vmatpush1.bf16.msra.mxu0 %v420
        %476 = vmatprep.subr.bf16.mxu0 %v419
        %477 = vmatpush1.bf16.msra.mxu0 %v418
        %478 = vmatprep.subr.bf16.mxu0 %v417
        %479 = vmatpush1.bf16.msra.mxu0 %v416
        %480 = vmatprep.subr.bf16.mxu0 %v415
        %481 = vmatpush1.bf16.msra.mxu0 %v414
        %482 = vmatprep.subr.bf16.mxu0 %v413
        %483 = vmatpush1.bf16.msra.mxu0 %v412
        %484 = vmatprep.subr.bf16.mxu0 %v411
        %485 = vmatpush1.bf16.msra.mxu0 %v410
        %486 = vmatprep.subr.bf16.mxu0 %v409
        %487 = vmatpush1.bf16.msra.mxu0 %v408
        %488 = vmatprep.subr.bf16.mxu0 %v439
        %489 = vmatpush2.bf16.msra.mxu0 %v438
        %490 = vmatprep.subr.bf16.mxu0 %v437
        %491 = vmatpush2.bf16.msra.mxu0 %v436
        %492 = vmatprep.subr.bf16.mxu0 %v435
        %493 = vmatpush2.bf16.msra.mxu0 %v434
        %494 = vmatprep.subr.bf16.mxu0 %v433
        %495 = vmatpush2.bf16.msra.mxu0 %v432
        %496 = vmatprep.subr.bf16.mxu0 %v431
        %497 = vmatpush2.bf16.msra.mxu0 %v430
        %498 = vmatprep.subr.bf16.mxu0 %v429
        %499 = vmatpush2.bf16.msra.mxu0 %v428
        %500 = vmatprep.subr.bf16.mxu0 %v427
        %501 = vmatpush2.bf16.msra.mxu0 %v426
        %502 = vmatprep.subr.bf16.mxu0 %v425
        %503 = vmatpush2.bf16.msra.mxu0 %v424
        %504 = vmatprep.mubr.bf16.mxu0 %v309
        %505 = vmatmul.mubr.bf16.gmra.mxu0 %v308
        %v506 = vpop.f32.mrf.mxu0
        %v507 = vadd.f32 %v295, %v506
        %v508 = vpop.f32.mrf.mxu0
        %v509 = vadd.f32 %v299, %v508
        %v510 = vpop.f32.mrf.mxu0
        %v511 = vadd.f32 %v295, %v510
        %v512 = vpop.f32.mrf.mxu0
        %v513 = vadd.f32 %v299, %v512
        %514 = vdwg.mxu0
        %v515 = vmax.f32 %v507, 0.0
        %v516 = vmax.f32 %v509, 0.0
        %v517 = vmax.f32 %v511, 0.0
        %v518 = vmax.f32 %v513, 0.0
        %521 = vrot.lane.b32.xlu0 %v515, 64
        %v522 = vpop.permute.xlu0 %521
        %523 = vrot.lane.b32.xlu0 %v517, 64
        %v524 = vpop.permute.xlu0 %523
        %v527 = vmax.f32 %v515, %v522
        %v528 = vmax.f32 %v517, %v524
        %531 = vrot.lane.b32.xlu0 %v516, 64
        %v532 = vpop.permute.xlu0 %531
        %533 = vrot.lane.b32.xlu0 %v518, 64
        %v534 = vpop.permute.xlu0 %533
        %v537 = vmax.f32 %v516, %v532
        %v538 = vmax.f32 %v518, %v534
        %v539 = vmax.f32 %v527, %v537
        %v540 = vmax.f32 %v528, %v538
        %541 = vst [vmem:[#allocation2] sm:$0xff] 0.0
        %542 = vst [vmem:[#allocation2 + $0x8] sm:$0x3] 0.0
        %543 = vst [vmem:[#allocation2 + $0x10] sm:$0xff] 0.0
        %544 = vst [vmem:[#allocation2 + $0x18] sm:$0x3] 0.0
        %547 = vrot.lane.b32.xlu0 %v539, 8
        %v548 = vpop.permute.xlu0 %547
        %549 = vrot.lane.b32.xlu0 %v540, 8
        %v550 = vpop.permute.xlu0 %549
        %vm553 = vcmask 588864
        %554 = vst.msk [vmem:[#allocation2 + $0x1] sm:$0xff] %vm553, %v548
        %555 = vst.msk [vmem:[#allocation2 + $0x11] sm:$0xff] %vm553, %v550
        %v556 = vld [vmem:[#allocation2] sm:$0xff]
        %v557 = vld [vmem:[#allocation2 + $0x10] sm:$0xff]
        %v558 = vld [vmem:[%s2] sm:$0xff]
        %v559 = vld [vmem:[%s2 + $0x8] sm:$0xff]
        %v560 = vld [vmem:[%s2 + $0x10] sm:$0xff]
        %v561 = vld [vmem:[%s2 + $0x18] sm:$0xff]
        %v562 = vld [vmem:[%s2 + $0x20] sm:$0xff]
        %v563 = vld [vmem:[%s2 + $0x28] sm:$0xff]
        %v564 = vld [vmem:[%s2 + $0x30] sm:$0xff]
        %v565 = vld [vmem:[%s2 + $0x38] sm:$0xff]
        %v566 = vld [vmem:[%s2 + $0x40] sm:$0xff]
        %v567 = vld [vmem:[%s2 + $0x48] sm:$0xff]
        %v568 = vld [vmem:[%s2 + $0x50] sm:$0xff]
        %v569 = vld [vmem:[%s2 + $0x58] sm:$0xff]
        %v570 = vld [vmem:[%s2 + $0x60] sm:$0xff]
        %v571 = vld [vmem:[%s2 + $0x68] sm:$0xff]
        %v572 = vld [vmem:[%s2 + $0x70] sm:$0xff]
        %v573 = vld [vmem:[%s2 + $0x78] sm:$0xff]
        %v574 = vld [vmem:[#allocation2 + $0x1] sm:$0xff]
        %v575 = vld [vmem:[#allocation2 + $0x11] sm:$0xff]
        %s576 = scalar_lea.vmem %s2, 128
        %v577 = vld [vmem:[%s576] sm:$0xff]
        %v578 = vld [vmem:[%s576 + $0x8] sm:$0xff]
        %v579 = vld [vmem:[%s576 + $0x10] sm:$0xff]
        %v580 = vld [vmem:[%s576 + $0x18] sm:$0xff]
        %v581 = vld [vmem:[%s576 + $0x20] sm:$0xff]
        %v582 = vld [vmem:[%s576 + $0x28] sm:$0xff]
        %v583 = vld [vmem:[%s576 + $0x30] sm:$0xff]
        %v584 = vld [vmem:[%s576 + $0x38] sm:$0xff]
        %v585 = vld [vmem:[%s576 + $0x40] sm:$0xff]
        %v586 = vld [vmem:[%s576 + $0x48] sm:$0xff]
        %v587 = vld [vmem:[%s576 + $0x50] sm:$0xff]
        %v588 = vld [vmem:[%s576 + $0x58] sm:$0xff]
        %v589 = vld [vmem:[%s576 + $0x60] sm:$0xff]
        %v590 = vld [vmem:[%s576 + $0x68] sm:$0xff]
        %v591 = vld [vmem:[%s576 + $0x70] sm:$0xff]
        %v592 = vld [vmem:[%s576 + $0x78] sm:$0xff]
        %593 = vmatprep.subr.mxu0 0.0
        %594 = vmatpush1.msra.mxu0 %v592
        %595 = vmatprep.subr.mxu0 0.0
        %596 = vmatpush1.msra.mxu0 %v591
        %597 = vmatprep.subr.mxu0 0.0
        %598 = vmatpush1.msra.mxu0 %v590
        %599 = vmatprep.subr.mxu0 0.0
        %600 = vmatpush1.msra.mxu0 %v589
        %601 = vmatprep.subr.mxu0 0.0
        %602 = vmatpush1.msra.mxu0 %v588
        %603 = vmatprep.subr.mxu0 0.0
        %604 = vmatpush1.msra.mxu0 %v587
        %605 = vmatprep.subr.mxu0 0.0
        %606 = vmatpush1.msra.mxu0 %v586
        %607 = vmatprep.subr.mxu0 0.0
        %608 = vmatpush1.msra.mxu0 %v585
        %609 = vmatprep.subr.mxu0 0.0
        %610 = vmatpush1.msra.mxu0 %v584
        %611 = vmatprep.subr.mxu0 0.0
        %612 = vmatpush1.msra.mxu0 %v583
        %613 = vmatprep.subr.mxu0 0.0
        %614 = vmatpush1.msra.mxu0 %v582
        %615 = vmatprep.subr.mxu0 0.0
        %616 = vmatpush1.msra.mxu0 %v581
        %617 = vmatprep.subr.mxu0 0.0
        %618 = vmatpush1.msra.mxu0 %v580
        %619 = vmatprep.subr.mxu0 0.0
        %620 = vmatpush1.msra.mxu0 %v579
        %621 = vmatprep.subr.mxu0 0.0
        %622 = vmatpush1.msra.mxu0 %v578
        %623 = vmatprep.subr.mxu0 0.0
        %624 = vmatpush1.msra.mxu0 %v577
        %625 = vmatprep.subr.mxu0 0.0
        %626 = vmatpush2.msra.mxu0 0.0
        %627 = vmatprep.subr.mxu0 0.0
        %628 = vmatpush2.msra.mxu0 0.0
        %629 = vmatprep.subr.mxu0 0.0
        %630 = vmatpush2.msra.mxu0 0.0
        %631 = vmatprep.subr.mxu0 0.0
        %632 = vmatpush2.msra.mxu0 0.0
        %633 = vmatprep.subr.mxu0 0.0
        %634 = vmatpush2.msra.mxu0 0.0
        %635 = vmatprep.subr.mxu0 0.0
        %636 = vmatpush2.msra.mxu0 0.0
        %637 = vmatprep.subr.mxu0 0.0
        %638 = vmatpush2.msra.mxu0 0.0
        %639 = vmatprep.subr.mxu0 0.0
        %640 = vmatpush2.msra.mxu0 0.0
        %641 = vmatprep.subr.mxu0 0.0
        %642 = vmatpush2.msra.mxu0 0.0
        %643 = vmatprep.subr.mxu0 0.0
        %644 = vmatpush2.msra.mxu0 0.0
        %645 = vmatprep.subr.mxu0 0.0
        %646 = vmatpush2.msra.mxu0 0.0
        %647 = vmatprep.subr.mxu0 0.0
        %648 = vmatpush2.msra.mxu0 0.0
        %649 = vmatprep.subr.mxu0 0.0
        %650 = vmatpush2.msra.mxu0 0.0
        %651 = vmatprep.subr.mxu0 0.0
        %652 = vmatpush2.msra.mxu0 0.0
        %653 = vmatprep.subr.mxu0 0.0
        %654 = vmatpush2.msra.mxu0 0.0
        %655 = vmatprep.subr.mxu0 0.0
        %656 = vmatpush2.msra.mxu0 0.0
        %657 = vmatprep.mubr.f32.mxu0 0.0
        %658 = vmatmul.mubr.f32.gmra.mxu0 %v574
        %v659 = vpop.f32.mrf.mxu0
        %v660 = vadd.f32 0.0, %v659
        %v661 = vpop.f32.mrf.mxu0
        %662 = vmatprep.mubr.f32.mxu0 0.0
        %663 = vmatmul.mubr.f32.gmra.mxu0 %v575
        %v664 = vpop.f32.mrf.mxu0
        %v665 = vadd.f32 0.0, %v664
        %v666 = vpop.f32.mrf.mxu0
        %667 = vdwg.mxu0
        %668 = vmatprep.subr.mxu0 0.0
        %669 = vmatpush1.msra.mxu0 %v573
        %670 = vmatprep.subr.mxu0 0.0
        %671 = vmatpush1.msra.mxu0 %v572
        %672 = vmatprep.subr.mxu0 0.0
        %673 = vmatpush1.msra.mxu0 %v571
        %674 = vmatprep.subr.mxu0 0.0
        %675 = vmatpush1.msra.mxu0 %v570
        %676 = vmatprep.subr.mxu0 0.0
        %677 = vmatpush1.msra.mxu0 %v569
        %678 = vmatprep.subr.mxu0 0.0
        %679 = vmatpush1.msra.mxu0 %v568
        %680 = vmatprep.subr.mxu0 0.0
        %681 = vmatpush1.msra.mxu0 %v567
        %682 = vmatprep.subr.mxu0 0.0
        %683 = vmatpush1.msra.mxu0 %v566
        %684 = vmatprep.subr.mxu0 0.0
        %685 = vmatpush1.msra.mxu0 %v565
        %686 = vmatprep.subr.mxu0 0.0
        %687 = vmatpush1.msra.mxu0 %v564
        %688 = vmatprep.subr.mxu0 0.0
        %689 = vmatpush1.msra.mxu0 %v563
        %690 = vmatprep.subr.mxu0 0.0
        %691 = vmatpush1.msra.mxu0 %v562
        %692 = vmatprep.subr.mxu0 0.0
        %693 = vmatpush1.msra.mxu0 %v561
        %694 = vmatprep.subr.mxu0 0.0
        %695 = vmatpush1.msra.mxu0 %v560
        %696 = vmatprep.subr.mxu0 0.0
        %697 = vmatpush1.msra.mxu0 %v559
        %698 = vmatprep.subr.mxu0 0.0
        %699 = vmatpush1.msra.mxu0 %v558
        %700 = vmatprep.subr.mxu0 0.0
        %701 = vmatpush2.msra.mxu0 0.0
        %702 = vmatprep.subr.mxu0 0.0
        %703 = vmatpush2.msra.mxu0 0.0
        %704 = vmatprep.subr.mxu0 0.0
        %705 = vmatpush2.msra.mxu0 0.0
        %706 = vmatprep.subr.mxu0 0.0
        %707 = vmatpush2.msra.mxu0 0.0
        %708 = vmatprep.subr.mxu0 0.0
        %709 = vmatpush2.msra.mxu0 0.0
        %710 = vmatprep.subr.mxu0 0.0
        %711 = vmatpush2.msra.mxu0 0.0
        %712 = vmatprep.subr.mxu0 0.0
        %713 = vmatpush2.msra.mxu0 0.0
        %714 = vmatprep.subr.mxu0 0.0
        %715 = vmatpush2.msra.mxu0 0.0
        %716 = vmatprep.subr.mxu0 0.0
        %717 = vmatpush2.msra.mxu0 0.0
        %718 = vmatprep.subr.mxu0 0.0
        %719 = vmatpush2.msra.mxu0 0.0
        %720 = vmatprep.subr.mxu0 0.0
        %721 = vmatpush2.msra.mxu0 0.0
        %722 = vmatprep.subr.mxu0 0.0
        %723 = vmatpush2.msra.mxu0 0.0
        %724 = vmatprep.subr.mxu0 0.0
        %725 = vmatpush2.msra.mxu0 0.0
        %726 = vmatprep.subr.mxu0 0.0
        %727 = vmatpush2.msra.mxu0 0.0
        %728 = vmatprep.subr.mxu0 0.0
        %729 = vmatpush2.msra.mxu0 0.0
        %730 = vmatprep.subr.mxu0 0.0
        %731 = vmatpush2.msra.mxu0 0.0
        %732 = vmatprep.mubr.f32.mxu0 0.0
        %733 = vmatmul.mubr.f32.gmra.mxu0 %v556
        %v734 = vpop.f32.mrf.mxu0
        %v735 = vadd.f32 %v660, %v734
        %v736 = vpop.f32.mrf.mxu0
        %737 = vmatprep.mubr.f32.mxu0 0.0
        %738 = vmatmul.mubr.f32.gmra.mxu0 %v557
        %v739 = vpop.f32.mrf.mxu0
        %v740 = vadd.f32 %v665, %v739
        %v741 = vpop.f32.mrf.mxu0
        %742 = vdwg.mxu0
        %v743 = vld [vmem:[#allocation2 + $0x2] sm:$0xff]
        %v744 = vld [vmem:[#allocation2 + $0x12] sm:$0xff]
        %s745 = scalar_lea.vmem %s2, 256
        %v746 = vld [vmem:[%s745] sm:$0xff]
        %v747 = vld [vmem:[%s745 + $0x8] sm:$0xff]
        %v748 = vld [vmem:[%s745 + $0x10] sm:$0xff]
        %v749 = vld [vmem:[%s745 + $0x18] sm:$0xff]
        %v750 = vld [vmem:[%s745 + $0x20] sm:$0xff]
        %v751 = vld [vmem:[%s745 + $0x28] sm:$0xff]
        %v752 = vld [vmem:[%s745 + $0x30] sm:$0xff]
        %v753 = vld [vmem:[%s745 + $0x38] sm:$0xff]
        %v754 = vld [vmem:[%s745 + $0x40] sm:$0xff]
        %v755 = vld [vmem:[%s745 + $0x48] sm:$0xff]
        %v756 = vld [vmem:[%s745 + $0x50] sm:$0xff]
        %v757 = vld [vmem:[%s745 + $0x58] sm:$0xff]
        %v758 = vld [vmem:[%s745 + $0x60] sm:$0xff]
        %v759 = vld [vmem:[%s745 + $0x68] sm:$0xff]
        %v760 = vld [vmem:[%s745 + $0x70] sm:$0xff]
        %v761 = vld [vmem:[%s745 + $0x78] sm:$0xff]
        %762 = vmatprep.subr.mxu0 0.0
        %763 = vmatpush1.msra.mxu0 %v761
        %764 = vmatprep.subr.mxu0 0.0
        %765 = vmatpush1.msra.mxu0 %v760
        %766 = vmatprep.subr.mxu0 0.0
        %767 = vmatpush1.msra.mxu0 %v759
        %768 = vmatprep.subr.mxu0 0.0
        %769 = vmatpush1.msra.mxu0 %v758
        %770 = vmatprep.subr.mxu0 0.0
        %771 = vmatpush1.msra.mxu0 %v757
        %772 = vmatprep.subr.mxu0 0.0
        %773 = vmatpush1.msra.mxu0 %v756
        %774 = vmatprep.subr.mxu0 0.0
        %775 = vmatpush1.msra.mxu0 %v755
        %776 = vmatprep.subr.mxu0 0.0
        %777 = vmatpush1.msra.mxu0 %v754
        %778 = vmatprep.subr.mxu0 0.0
        %779 = vmatpush1.msra.mxu0 %v753
        %780 = vmatprep.subr.mxu0 0.0
        %781 = vmatpush1.msra.mxu0 %v752
        %782 = vmatprep.subr.mxu0 0.0
        %783 = vmatpush1.msra.mxu0 %v751
        %784 = vmatprep.subr.mxu0 0.0
        %785 = vmatpush1.msra.mxu0 %v750
        %786 = vmatprep.subr.mxu0 0.0
        %787 = vmatpush1.msra.mxu0 %v749
        %788 = vmatprep.subr.mxu0 0.0
        %789 = vmatpush1.msra.mxu0 %v748
        %790 = vmatprep.subr.mxu0 0.0
        %791 = vmatpush1.msra.mxu0 %v747
        %792 = vmatprep.subr.mxu0 0.0
        %793 = vmatpush1.msra.mxu0 %v746
        %794 = vmatprep.subr.mxu0 0.0
        %795 = vmatpush2.msra.mxu0 0.0
        %796 = vmatprep.subr.mxu0 0.0
        %797 = vmatpush2.msra.mxu0 0.0
        %798 = vmatprep.subr.mxu0 0.0
        %799 = vmatpush2.msra.mxu0 0.0
        %800 = vmatprep.subr.mxu0 0.0
        %801 = vmatpush2.msra.mxu0 0.0
        %802 = vmatprep.subr.mxu0 0.0
        %803 = vmatpush2.msra.mxu0 0.0
        %804 = vmatprep.subr.mxu0 0.0
        %805 = vmatpush2.msra.mxu0 0.0
        %806 = vmatprep.subr.mxu0 0.0
        %807 = vmatpush2.msra.mxu0 0.0
        %808 = vmatprep.subr.mxu0 0.0
        %809 = vmatpush2.msra.mxu0 0.0
        %810 = vmatprep.subr.mxu0 0.0
        %811 = vmatpush2.msra.mxu0 0.0
        %812 = vmatprep.subr.mxu0 0.0
        %813 = vmatpush2.msra.mxu0 0.0
        %814 = vmatprep.subr.mxu0 0.0
        %815 = vmatpush2.msra.mxu0 0.0
        %816 = vmatprep.subr.mxu0 0.0
        %817 = vmatpush2.msra.mxu0 0.0
        %818 = vmatprep.subr.mxu0 0.0
        %819 = vmatpush2.msra.mxu0 0.0
        %820 = vmatprep.subr.mxu0 0.0
        %821 = vmatpush2.msra.mxu0 0.0
        %822 = vmatprep.subr.mxu0 0.0
        %823 = vmatpush2.msra.mxu0 0.0
        %824 = vmatprep.subr.mxu0 0.0
        %825 = vmatpush2.msra.mxu0 0.0
        %826 = vmatprep.mubr.f32.mxu0 0.0
        %827 = vmatmul.mubr.f32.gmra.mxu0 %v743
        %v828 = vpop.f32.mrf.mxu0
        %v829 = vadd.f32 0.0, %v828
        %v830 = vpop.f32.mrf.mxu0
        %831 = vmatprep.mubr.f32.mxu0 0.0
        %832 = vmatmul.mubr.f32.gmra.mxu0 %v744
        %v833 = vpop.f32.mrf.mxu0
        %v834 = vadd.f32 0.0, %v833
        %v835 = vpop.f32.mrf.mxu0
        %836 = vdwg.mxu0
        %v837 = vadd.f32 %v735, %v829
        %v838 = vadd.f32 %v740, %v834
        %v839 = vld [vmem:[%s5 + $0x1] ss:$0 sm:$0xff]
        %v840 = vadd.f32 %v837, %v839
        %v841 = vadd.f32 %v838, %v839
        %v842 = vmax.f32 %v840, 0.0
        %v843 = vmax.f32 %v841, 0.0
        %v846 = vrot.slane %v842, 1
        %v847 = vrot.slane %v843, 1
        %v850 = vmax.f32 %v842, %v846
        %v851 = vmax.f32 %v843, %v847
        %v855 = vunpack.c.l.s4 1983009808
        %v856 = vunpack.c.0.s8 %v855
        %v857 = vlaneseq
        %v858 = vshrl.u32 %v857, 7
        %v859 = vsub.s32 %v856, %v858
        %v860 = vrot.slane %v850, %v859
        %v862 = vunpack.c.l.s4 1983009808
        %v863 = vunpack.c.0.s8 %v862
        %v864 = vlaneseq
        %v865 = vshrl.u32 %v864, 7
        %v866 = vsub.s32 %v863, %v865
        %v867 = vrot.slane %v851, %v866
        %vm868 = vcmask 1044484
        %v869 = vsel %vm868, %v860, %v860
        %vm870 = vcmask 1046534
        %v871 = vsel %vm870, %v860, %v869
        %v872 = vrot.slane %v867, 7
        %vm873 = vcmask 1041409
        %v874 = vsel %vm873, %v872, %v871
        %vm875 = vcmask 1043459
        %v876 = vsel %vm875, %v872, %v874
        %vm877 = vcmask 1045509
        %v878 = vsel %vm877, %v872, %v876
        %vm879 = vcmask 1047559
        %v880 = vsel %vm879, %v872, %v878
        %882 = vst [vmem:[#allocation3] sm:$0x3] %v880
        %v883 = vcombine.high %v860, %v860
        %v884 = vcombine.high %v867, %v867
        %v885 = vsel %vm868, %v883, %v883
        %v886 = vsel %vm870, %v883, %v885
        %v887 = vrot.slane %v884, 7
        %v888 = vsel %vm873, %v887, %v886
        %v889 = vsel %vm875, %v887, %v888
        %v890 = vsel %vm877, %v887, %v889
        %v891 = vsel %vm879, %v887, %v890
        %893 = vst [vmem:[#allocation3 + $0x2] sm:$0x3] %v891
        %v894 = vcombine.high %v850, %v850
        %v896 = vunpack.c.l.s4 1983009808
        %v897 = vunpack.c.0.s8 %v896
        %v898 = vlaneseq
        %v899 = vshrl.u32 %v898, 7
        %v900 = vsub.s32 %v897, %v899
        %v901 = vrot.slane %v894, %v900
        %v902 = vcombine.high %v851, %v851
        %v904 = vunpack.c.l.s4 1983009808
        %v905 = vunpack.c.0.s8 %v904
        %v906 = vlaneseq
        %v907 = vshrl.u32 %v906, 7
        %v908 = vsub.s32 %v905, %v907
        %v909 = vrot.slane %v902, %v908
        %v910 = vsel %vm868, %v901, %v901
        %v911 = vsel %vm870, %v901, %v910
        %v912 = vrot.slane %v909, 7
        %v913 = vsel %vm873, %v912, %v911
        %v914 = vsel %vm875, %v912, %v913
        %v915 = vsel %vm877, %v912, %v914
        %v916 = vsel %vm879, %v912, %v915
        %918 = vst [vmem:[#allocation3 + $0x4] sm:$0x3] %v916
        %v919 = vcombine.high %v901, %v901
        %v920 = vcombine.high %v909, %v909
        %v921 = vsel %vm868, %v919, %v919
        %v922 = vsel %vm870, %v919, %v921
        %v923 = vrot.slane %v920, 7
        %v924 = vsel %vm873, %v923, %v922
        %v925 = vsel %vm875, %v923, %v924
        %v926 = vsel %vm877, %v923, %v925
        %v927 = vsel %vm879, %v923, %v926
        %929 = vst [vmem:[#allocation3 + $0x6] sm:$0x3] %v927
        %v930 = vld [vmem:[#allocation3] sm:$0xff]
        %932 = vrot.lane.b32.xlu0 %v930, 112
        %v933 = vpop.permute.xlu0 %932
        %v934 = vrot.slane %v933, 2
        %vm935 = vcmask 916480
        %v936 = vsel %vm935, %v933, %v934
        %v938 = vmax.f32 %v930, %v936
        %v939 = vld [vmem:[%s3] sm:$0xff]
        %v940 = vld [vmem:[%s3 + $0x8] sm:$0xff]
        %v941 = vld [vmem:[%s3 + $0x10] sm:$0xff]
        %v942 = vld [vmem:[%s3 + $0x18] sm:$0xff]
        %v943 = vld [vmem:[%s3 + $0x20] sm:$0xff]
        %v944 = vld [vmem:[%s3 + $0x28] sm:$0xff]
        %v945 = vld [vmem:[%s3 + $0x30] sm:$0xff]
        %v946 = vld [vmem:[%s3 + $0x38] sm:$0xff]
        %v947 = vld [vmem:[%s3 + $0x40] sm:$0xff]
        %v948 = vld [vmem:[%s3 + $0x48] sm:$0xff]
        %v949 = vld [vmem:[%s3 + $0x50] sm:$0xff]
        %v950 = vld [vmem:[%s3 + $0x58] sm:$0xff]
        %v951 = vld [vmem:[%s3 + $0x60] sm:$0xff]
        %v952 = vld [vmem:[%s3 + $0x68] sm:$0xff]
        %v953 = vld [vmem:[%s3 + $0x70] sm:$0xff]
        %v954 = vld [vmem:[%s3 + $0x78] sm:$0xff]
        %v955 = vld [vmem:[%s3 + $0x80] sm:$0xff]
        %v956 = vld [vmem:[%s3 + $0x88] sm:$0xff]
        %v957 = vld [vmem:[%s3 + $0x90] sm:$0xff]
        %v958 = vld [vmem:[%s3 + $0x98] sm:$0xff]
        %v959 = vld [vmem:[%s3 + $0xa0] sm:$0xff]
        %v960 = vld [vmem:[%s3 + $0xa8] sm:$0xff]
        %v961 = vld [vmem:[%s3 + $0xb0] sm:$0xff]
        %v962 = vld [vmem:[%s3 + $0xb8] sm:$0xff]
        %v963 = vld [vmem:[%s3 + $0xc0] sm:$0xff]
        %v964 = vld [vmem:[%s3 + $0xc8] sm:$0xff]
        %v965 = vld [vmem:[%s3 + $0xd0] sm:$0xff]
        %v966 = vld [vmem:[%s3 + $0xd8] sm:$0xff]
        %v967 = vld [vmem:[%s3 + $0xe0] sm:$0xff]
        %v968 = vld [vmem:[%s3 + $0xe8] sm:$0xff]
        %v969 = vld [vmem:[%s3 + $0xf0] sm:$0xff]
        %v970 = vld [vmem:[%s3 + $0xf8] sm:$0xff]
        %v971 = vld [vmem:[%s3 + $0x100] sm:$0xff]
        %v972 = vld [vmem:[%s3 + $0x108] sm:$0xff]
        %v973 = vld [vmem:[%s3 + $0x110] sm:$0xff]
        %v974 = vld [vmem:[%s3 + $0x118] sm:$0xff]
        %v975 = vld [vmem:[%s3 + $0x120] sm:$0xff]
        %v976 = vld [vmem:[%s3 + $0x128] sm:$0xff]
        %v977 = vld [vmem:[%s3 + $0x130] sm:$0xff]
        %v978 = vld [vmem:[%s3 + $0x138] sm:$0xff]
        %v979 = vld [vmem:[%s3 + $0x140] sm:$0xff]
        %v980 = vld [vmem:[%s3 + $0x148] sm:$0xff]
        %v981 = vld [vmem:[%s3 + $0x150] sm:$0xff]
        %v982 = vld [vmem:[%s3 + $0x158] sm:$0xff]
        %v983 = vld [vmem:[%s3 + $0x160] sm:$0xff]
        %v984 = vld [vmem:[%s3 + $0x168] sm:$0xff]
        %v985 = vld [vmem:[%s3 + $0x170] sm:$0xff]
        %v986 = vld [vmem:[%s3 + $0x178] sm:$0xff]
        %v987 = vld [vmem:[%s3 + $0x180] sm:$0xff]
        %v988 = vld [vmem:[%s3 + $0x188] sm:$0xff]
        %v989 = vld [vmem:[%s3 + $0x190] sm:$0xff]
        %v990 = vld [vmem:[%s3 + $0x198] sm:$0xff]
        %v991 = vld [vmem:[%s3 + $0x1a0] sm:$0xff]
        %v992 = vld [vmem:[%s3 + $0x1a8] sm:$0xff]
        %v993 = vld [vmem:[%s3 + $0x1b0] sm:$0xff]
        %v994 = vld [vmem:[%s3 + $0x1b8] sm:$0xff]
        %v995 = vld [vmem:[%s3 + $0x1c0] sm:$0xff]
        %v996 = vld [vmem:[%s3 + $0x1c8] sm:$0xff]
        %v997 = vld [vmem:[%s3 + $0x1d0] sm:$0xff]
        %v998 = vld [vmem:[%s3 + $0x1d8] sm:$0xff]
        %v999 = vld [vmem:[%s3 + $0x1e0] sm:$0xff]
        %v1000 = vld [vmem:[%s3 + $0x1e8] sm:$0xff]
        %v1001 = vld [vmem:[%s5 + $0x2] ss:$0 sm:$0xff]
        %v1003 = vcombine.high %v938, %v938
        %v1005 = vunpack.c.l.s4 1983009808
        %v1006 = vunpack.c.0.s8 %v1005
        %v1007 = vlaneseq
        %v1008 = vshrl.u32 %v1007, 7
        %v1009 = vsub.s32 %v1006, %v1008
        %v1010 = vrot.slane %v938, %v1009
        %v1012 = vunpack.c.l.s4 1983009808
        %v1013 = vunpack.c.0.s8 %v1012
        %v1014 = vlaneseq
        %v1015 = vshrl.u32 %v1014, 7
        %v1016 = vsub.s32 %v1013, %v1015
        %v1017 = vrot.slane %v1003, %v1016
        %v1018 = vcombine.high %v1010, %v1010
        %v1019 = vcombine.high %v1017, %v1017
        %v1023 = vsel %vm935, %v1019, 0
        %1025 = vmatprep.subr.mxu0 0.0
        %1026 = vmatpush1.msra.mxu0 %v954
        %1027 = vmatprep.subr.mxu0 0.0
        %1028 = vmatpush1.msra.mxu0 %v953
        %1029 = vmatprep.subr.mxu0 0.0
        %1030 = vmatpush1.msra.mxu0 %v952
        %1031 = vmatprep.subr.mxu0 0.0
        %1032 = vmatpush1.msra.mxu0 %v951
        %1033 = vmatprep.subr.mxu0 0.0
        %1034 = vmatpush1.msra.mxu0 %v950
        %1035 = vmatprep.subr.mxu0 0.0
        %1036 = vmatpush1.msra.mxu0 %v949
        %1037 = vmatprep.subr.mxu0 0.0
        %1038 = vmatpush1.msra.mxu0 %v948
        %1039 = vmatprep.subr.mxu0 0.0
        %1040 = vmatpush1.msra.mxu0 %v947
        %1041 = vmatprep.subr.mxu0 0.0
        %1042 = vmatpush1.msra.mxu0 %v946
        %1043 = vmatprep.subr.mxu0 0.0
        %1044 = vmatpush1.msra.mxu0 %v945
        %1045 = vmatprep.subr.mxu0 0.0
        %1046 = vmatpush1.msra.mxu0 %v944
        %1047 = vmatprep.subr.mxu0 0.0
        %1048 = vmatpush1.msra.mxu0 %v943
        %1049 = vmatprep.subr.mxu0 0.0
        %1050 = vmatpush1.msra.mxu0 %v942
        %1051 = vmatprep.subr.mxu0 0.0
        %1052 = vmatpush1.msra.mxu0 %v941
        %1053 = vmatprep.subr.mxu0 0.0
        %1054 = vmatpush1.msra.mxu0 %v940
        %1055 = vmatprep.subr.mxu0 0.0
        %1056 = vmatpush1.msra.mxu0 %v939
        %1057 = vmatprep.subr.mxu0 0.0
        %1058 = vmatpush2.msra.mxu0 %v970
        %1059 = vmatprep.subr.mxu0 0.0
        %1060 = vmatpush2.msra.mxu0 %v969
        %1061 = vmatprep.subr.mxu0 0.0
        %1062 = vmatpush2.msra.mxu0 %v968
        %1063 = vmatprep.subr.mxu0 0.0
        %1064 = vmatpush2.msra.mxu0 %v967
        %1065 = vmatprep.subr.mxu0 0.0
        %1066 = vmatpush2.msra.mxu0 %v966
        %1067 = vmatprep.subr.mxu0 0.0
        %1068 = vmatpush2.msra.mxu0 %v965
        %1069 = vmatprep.subr.mxu0 0.0
        %1070 = vmatpush2.msra.mxu0 %v964
        %1071 = vmatprep.subr.mxu0 0.0
        %1072 = vmatpush2.msra.mxu0 %v963
        %1073 = vmatprep.subr.mxu0 0.0
        %1074 = vmatpush2.msra.mxu0 %v962
        %1075 = vmatprep.subr.mxu0 0.0
        %1076 = vmatpush2.msra.mxu0 %v961
        %1077 = vmatprep.subr.mxu0 0.0
        %1078 = vmatpush2.msra.mxu0 %v960
        %1079 = vmatprep.subr.mxu0 0.0
        %1080 = vmatpush2.msra.mxu0 %v959
        %1081 = vmatprep.subr.mxu0 0.0
        %1082 = vmatpush2.msra.mxu0 %v958
        %1083 = vmatprep.subr.mxu0 0.0
        %1084 = vmatpush2.msra.mxu0 %v957
        %1085 = vmatprep.subr.mxu0 0.0
        %1086 = vmatpush2.msra.mxu0 %v956
        %1087 = vmatprep.subr.mxu0 0.0
        %1088 = vmatpush2.msra.mxu0 %v955
        %1089 = vmatprep.mubr.f32.mxu0 %v1018
        %1090 = vmatmul.mubr.f32.gmra.mxu0 %v1010
        %v1091 = vpop.f32.mrf.mxu0
        %v1092 = vadd.f32 %v1001, %v1091
        %v1093 = vpop.f32.mrf.mxu0
        %1094 = vdwg.mxu0
        %1095 = vmatprep.subr.mxu0 0.0
        %1096 = vmatpush1.msra.mxu0 %v986
        %1097 = vmatprep.subr.mxu0 0.0
        %1098 = vmatpush1.msra.mxu0 %v985
        %1099 = vmatprep.subr.mxu0 0.0
        %1100 = vmatpush1.msra.mxu0 %v984
        %1101 = vmatprep.subr.mxu0 0.0
        %1102 = vmatpush1.msra.mxu0 %v983
        %1103 = vmatprep.subr.mxu0 0.0
        %1104 = vmatpush1.msra.mxu0 %v982
        %1105 = vmatprep.subr.mxu0 0.0
        %1106 = vmatpush1.msra.mxu0 %v981
        %1107 = vmatprep.subr.mxu0 0.0
        %1108 = vmatpush1.msra.mxu0 %v980
        %1109 = vmatprep.subr.mxu0 0.0
        %1110 = vmatpush1.msra.mxu0 %v979
        %1111 = vmatprep.subr.mxu0 0.0
        %1112 = vmatpush1.msra.mxu0 %v978
        %1113 = vmatprep.subr.mxu0 0.0
        %1114 = vmatpush1.msra.mxu0 %v977
        %1115 = vmatprep.subr.mxu0 0.0
        %1116 = vmatpush1.msra.mxu0 %v976
        %1117 = vmatprep.subr.mxu0 0.0
        %1118 = vmatpush1.msra.mxu0 %v975
        %1119 = vmatprep.subr.mxu0 0.0
        %1120 = vmatpush1.msra.mxu0 %v974
        %1121 = vmatprep.subr.mxu0 0.0
        %1122 = vmatpush1.msra.mxu0 %v973
        %1123 = vmatprep.subr.mxu0 0.0
        %1124 = vmatpush1.msra.mxu0 %v972
        %1125 = vmatprep.subr.mxu0 0.0
        %1126 = vmatpush1.msra.mxu0 %v971
        %1127 = vmatprep.subr.mxu0 0.0
        %1128 = vmatpush2.msra.mxu0 0.0
        %1129 = vmatprep.subr.mxu0 0.0
        %1130 = vmatpush2.msra.mxu0 0.0
        %1131 = vmatprep.subr.mxu0 0.0
        %1132 = vmatpush2.msra.mxu0 %v1000
        %1133 = vmatprep.subr.mxu0 0.0
        %1134 = vmatpush2.msra.mxu0 %v999
        %1135 = vmatprep.subr.mxu0 0.0
        %1136 = vmatpush2.msra.mxu0 %v998
        %1137 = vmatprep.subr.mxu0 0.0
        %1138 = vmatpush2.msra.mxu0 %v997
        %1139 = vmatprep.subr.mxu0 0.0
        %1140 = vmatpush2.msra.mxu0 %v996
        %1141 = vmatprep.subr.mxu0 0.0
        %1142 = vmatpush2.msra.mxu0 %v995
        %1143 = vmatprep.subr.mxu0 0.0
        %1144 = vmatpush2.msra.mxu0 %v994
        %1145 = vmatprep.subr.mxu0 0.0
        %1146 = vmatpush2.msra.mxu0 %v993
        %1147 = vmatprep.subr.mxu0 0.0
        %1148 = vmatpush2.msra.mxu0 %v992
        %1149 = vmatprep.subr.mxu0 0.0
        %1150 = vmatpush2.msra.mxu0 %v991
        %1151 = vmatprep.subr.mxu0 0.0
        %1152 = vmatpush2.msra.mxu0 %v990
        %1153 = vmatprep.subr.mxu0 0.0
        %1154 = vmatpush2.msra.mxu0 %v989
        %1155 = vmatprep.subr.mxu0 0.0
        %1156 = vmatpush2.msra.mxu0 %v988
        %1157 = vmatprep.subr.mxu0 0.0
        %1158 = vmatpush2.msra.mxu0 %v987
        %1159 = vmatprep.mubr.f32.mxu0 %v1023
        %1160 = vmatmul.mubr.f32.gmra.mxu0 %v1017
        %v1161 = vpop.f32.mrf.mxu0
        %v1162 = vadd.f32 %v1092, %v1161
        %v1163 = vpop.f32.mrf.mxu0
        %1164 = vdwg.mxu0
        %v1165 = vmax.f32 %v1162, 0.0
        %v1166 = vld [vmem:[%s4] sm:$0xff]
        %v1167 = vld [vmem:[%s4 + $0x10] sm:$0xff]
        %v1168 = vld [vmem:[%s4 + $0x20] sm:$0xff]
        %v1169 = vld [vmem:[%s4 + $0x30] sm:$0xff]
        %v1170 = vld [vmem:[%s4 + $0x40] sm:$0xff]
        %v1171 = vld [vmem:[%s4 + $0x50] sm:$0xff]
        %v1172 = vld [vmem:[%s4 + $0x60] sm:$0xff]
        %v1173 = vld [vmem:[%s4 + $0x70] sm:$0xff]
        %v1174 = vld [vmem:[%s5 + $0x3] ss:$0 sm:$0xff]
        %vm1175 = vcmask 523264
        %v1177 = vsel %vm1175, %v1165, 0
        %1179 = vmatprep.subr.mxu0 0.0
        %1180 = vmatpush1.msra.mxu0 0.0
        %1181 = vmatprep.subr.mxu0 0.0
        %1182 = vmatpush1.msra.mxu0 0.0
        %1183 = vmatprep.subr.mxu0 0.0
        %1184 = vmatpush1.msra.mxu0 0.0
        %1185 = vmatprep.subr.mxu0 0.0
        %1186 = vmatpush1.msra.mxu0 0.0
        %1187 = vmatprep.subr.mxu0 0.0
        %1188 = vmatpush1.msra.mxu0 0.0
        %1189 = vmatprep.subr.mxu0 0.0
        %1190 = vmatpush1.msra.mxu0 0.0
        %1191 = vmatprep.subr.mxu0 0.0
        %1192 = vmatpush1.msra.mxu0 0.0
        %1193 = vmatprep.subr.mxu0 0.0
        %1194 = vmatpush1.msra.mxu0 0.0
        %1195 = vmatprep.subr.mxu0 0.0
        %1196 = vmatpush1.msra.mxu0 %v1173
        %1197 = vmatprep.subr.mxu0 0.0
        %1198 = vmatpush1.msra.mxu0 %v1172
        %1199 = vmatprep.subr.mxu0 0.0
        %1200 = vmatpush1.msra.mxu0 %v1171
        %1201 = vmatprep.subr.mxu0 0.0
        %1202 = vmatpush1.msra.mxu0 %v1170
        %1203 = vmatprep.subr.mxu0 0.0
        %1204 = vmatpush1.msra.mxu0 %v1169
        %1205 = vmatprep.subr.mxu0 0.0
        %1206 = vmatpush1.msra.mxu0 %v1168
        %1207 = vmatprep.subr.mxu0 0.0
        %1208 = vmatpush1.msra.mxu0 %v1167
        %1209 = vmatprep.subr.mxu0 0.0
        %1210 = vmatpush1.msra.mxu0 %v1166
        %1211 = vmatprep.subr.mxu0 0.0
        %1212 = vmatpush2.msra.mxu0 0.0
        %1213 = vmatprep.subr.mxu0 0.0
        %1214 = vmatpush2.msra.mxu0 0.0
        %1215 = vmatprep.subr.mxu0 0.0
        %1216 = vmatpush2.msra.mxu0 0.0
        %1217 = vmatprep.subr.mxu0 0.0
        %1218 = vmatpush2.msra.mxu0 0.0
        %1219 = vmatprep.subr.mxu0 0.0
        %1220 = vmatpush2.msra.mxu0 0.0
        %1221 = vmatprep.subr.mxu0 0.0
        %1222 = vmatpush2.msra.mxu0 0.0
        %1223 = vmatprep.subr.mxu0 0.0
        %1224 = vmatpush2.msra.mxu0 0.0
        %1225 = vmatprep.subr.mxu0 0.0
        %1226 = vmatpush2.msra.mxu0 0.0
        %1227 = vmatprep.subr.mxu0 0.0
        %1228 = vmatpush2.msra.mxu0 0.0
        %1229 = vmatprep.subr.mxu0 0.0
        %1230 = vmatpush2.msra.mxu0 0.0
        %1231 = vmatprep.subr.mxu0 0.0
        %1232 = vmatpush2.msra.mxu0 0.0
        %1233 = vmatprep.subr.mxu0 0.0
        %1234 = vmatpush2.msra.mxu0 0.0
        %1235 = vmatprep.subr.mxu0 0.0
        %1236 = vmatpush2.msra.mxu0 0.0
        %1237 = vmatprep.subr.mxu0 0.0
        %1238 = vmatpush2.msra.mxu0 0.0
        %1239 = vmatprep.subr.mxu0 0.0
        %1240 = vmatpush2.msra.mxu0 0.0
        %1241 = vmatprep.subr.mxu0 0.0
        %1242 = vmatpush2.msra.mxu0 0.0
        %1243 = vmatprep.mubr.f32.mxu0 0.0
        %1244 = vmatmul.mubr.f32.gmra.mxu0 %v1177
        %v1245 = vpop.f32.mrf.mxu0
        %v1246 = vadd.f32 %v1174, %v1245
        %v1247 = vpop.f32.mrf.mxu0
        %1248 = vdwg.mxu0
        %v1249 = vmax.f32 %v1246, 0.0
        %v1250 = vld [vmem:[%s4] sm:$0xff]
        %v1251 = vld [vmem:[%s4 + $0x8] sm:$0xff]
        %v1252 = vld [vmem:[%s4 + $0x10] sm:$0xff]
        %v1253 = vld [vmem:[%s4 + $0x18] sm:$0xff]
        %v1254 = vld [vmem:[%s4 + $0x20] sm:$0xff]
        %v1255 = vld [vmem:[%s4 + $0x28] sm:$0xff]
        %v1256 = vld [vmem:[%s4 + $0x30] sm:$0xff]
        %v1257 = vld [vmem:[%s4 + $0x38] sm:$0xff]
        %v1258 = vld [vmem:[%s4 + $0x40] sm:$0xff]
        %v1259 = vld [vmem:[%s4 + $0x48] sm:$0xff]
        %v1260 = vld [vmem:[%s4 + $0x50] sm:$0xff]
        %v1261 = vld [vmem:[%s4 + $0x58] sm:$0xff]
        %v1262 = vld [vmem:[%s4 + $0x60] sm:$0xff]
        %v1263 = vld [vmem:[%s4 + $0x68] sm:$0xff]
        %v1264 = vld [vmem:[%s4 + $0x70] sm:$0xff]
        %v1265 = vld [vmem:[%s4 + $0x78] sm:$0xff]
        %v1266 = vld [vmem:[%s5 + $0x4] ss:$0 sm:$0xff]
        %1283 = vrot.lane.b32.xlu0 %v1250, 64
        %v1284 = vpop.permute.xlu0 %1283
        %1285 = vrot.lane.b32.xlu0 %v1251, 64
        %v1286 = vpop.permute.xlu0 %1285
        %1287 = vrot.lane.b32.xlu0 %v1252, 64
        %v1288 = vpop.permute.xlu0 %1287
        %1289 = vrot.lane.b32.xlu0 %v1253, 64
        %v1290 = vpop.permute.xlu0 %1289
        %1291 = vrot.lane.b32.xlu0 %v1254, 64
        %v1292 = vpop.permute.xlu0 %1291
        %1293 = vrot.lane.b32.xlu0 %v1255, 64
        %v1294 = vpop.permute.xlu0 %1293
        %1295 = vrot.lane.b32.xlu0 %v1256, 64
        %v1296 = vpop.permute.xlu0 %1295
        %1297 = vrot.lane.b32.xlu0 %v1257, 64
        %v1298 = vpop.permute.xlu0 %1297
        %1299 = vrot.lane.b32.xlu0 %v1258, 64
        %v1300 = vpop.permute.xlu0 %1299
        %1301 = vrot.lane.b32.xlu0 %v1259, 64
        %v1302 = vpop.permute.xlu0 %1301
        %1303 = vrot.lane.b32.xlu0 %v1260, 64
        %v1304 = vpop.permute.xlu0 %1303
        %1305 = vrot.lane.b32.xlu0 %v1261, 64
        %v1306 = vpop.permute.xlu0 %1305
        %1307 = vrot.lane.b32.xlu0 %v1262, 64
        %v1308 = vpop.permute.xlu0 %1307
        %1309 = vrot.lane.b32.xlu0 %v1263, 64
        %v1310 = vpop.permute.xlu0 %1309
        %1311 = vrot.lane.b32.xlu0 %v1264, 64
        %v1312 = vpop.permute.xlu0 %1311
        %1313 = vrot.lane.b32.xlu0 %v1265, 64
        %v1314 = vpop.permute.xlu0 %1313
        %v1315 = vsel %vm1175, %v1284, %v1286
        %v1316 = vsel %vm1175, %v1288, %v1290
        %v1317 = vsel %vm1175, %v1292, %v1294
        %v1318 = vsel %vm1175, %v1296, %v1298
        %v1319 = vsel %vm1175, %v1300, %v1302
        %v1320 = vsel %vm1175, %v1304, %v1306
        %v1321 = vsel %vm1175, %v1308, %v1310
        %v1322 = vsel %vm1175, %v1312, %v1314
        %v1332 = vsel %vm1175, %v1249, 0
        %1334 = vmatprep.subr.mxu0 0.0
        %1335 = vmatpush1.msra.mxu0 0.0
        %1336 = vmatprep.subr.mxu0 0.0
        %1337 = vmatpush1.msra.mxu0 0.0
        %1338 = vmatprep.subr.mxu0 0.0
        %1339 = vmatpush1.msra.mxu0 0.0
        %1340 = vmatprep.subr.mxu0 0.0
        %1341 = vmatpush1.msra.mxu0 0.0
        %1342 = vmatprep.subr.mxu0 0.0
        %1343 = vmatpush1.msra.mxu0 0.0
        %1344 = vmatprep.subr.mxu0 0.0
        %1345 = vmatpush1.msra.mxu0 0.0
        %1346 = vmatprep.subr.mxu0 0.0
        %1347 = vmatpush1.msra.mxu0 0.0
        %1348 = vmatprep.subr.mxu0 0.0
        %1349 = vmatpush1.msra.mxu0 0.0
        %1350 = vmatprep.subr.mxu0 0.0
        %1351 = vmatpush1.msra.mxu0 %v1322
        %1352 = vmatprep.subr.mxu0 0.0
        %1353 = vmatpush1.msra.mxu0 %v1321
        %1354 = vmatprep.subr.mxu0 0.0
        %1355 = vmatpush1.msra.mxu0 %v1320
        %1356 = vmatprep.subr.mxu0 0.0
        %1357 = vmatpush1.msra.mxu0 %v1319
        %1358 = vmatprep.subr.mxu0 0.0
        %1359 = vmatpush1.msra.mxu0 %v1318
        %1360 = vmatprep.subr.mxu0 0.0
        %1361 = vmatpush1.msra.mxu0 %v1317
        %1362 = vmatprep.subr.mxu0 0.0
        %1363 = vmatpush1.msra.mxu0 %v1316
        %1364 = vmatprep.subr.mxu0 0.0
        %1365 = vmatpush1.msra.mxu0 %v1315
        %1366 = vmatprep.subr.mxu0 0.0
        %1367 = vmatpush2.msra.mxu0 0.0
        %1368 = vmatprep.subr.mxu0 0.0
        %1369 = vmatpush2.msra.mxu0 0.0
        %1370 = vmatprep.subr.mxu0 0.0
        %1371 = vmatpush2.msra.mxu0 0.0
        %1372 = vmatprep.subr.mxu0 0.0
        %1373 = vmatpush2.msra.mxu0 0.0
        %1374 = vmatprep.subr.mxu0 0.0
        %1375 = vmatpush2.msra.mxu0 0.0
        %1376 = vmatprep.subr.mxu0 0.0
        %1377 = vmatpush2.msra.mxu0 0.0
        %1378 = vmatprep.subr.mxu0 0.0
        %1379 = vmatpush2.msra.mxu0 0.0
        %1380 = vmatprep.subr.mxu0 0.0
        %1381 = vmatpush2.msra.mxu0 0.0
        %1382 = vmatprep.subr.mxu0 0.0
        %1383 = vmatpush2.msra.mxu0 0.0
        %1384 = vmatprep.subr.mxu0 0.0
        %1385 = vmatpush2.msra.mxu0 0.0
        %1386 = vmatprep.subr.mxu0 0.0
        %1387 = vmatpush2.msra.mxu0 0.0
        %1388 = vmatprep.subr.mxu0 0.0
        %1389 = vmatpush2.msra.mxu0 0.0
        %1390 = vmatprep.subr.mxu0 0.0
        %1391 = vmatpush2.msra.mxu0 0.0
        %1392 = vmatprep.subr.mxu0 0.0
        %1393 = vmatpush2.msra.mxu0 0.0
        %1394 = vmatprep.subr.mxu0 0.0
        %1395 = vmatpush2.msra.mxu0 0.0
        %1396 = vmatprep.subr.mxu0 0.0
        %1397 = vmatpush2.msra.mxu0 0.0
        %1398 = vmatprep.mubr.f32.mxu0 0.0
        %1399 = vmatmul.mubr.f32.gmra.mxu0 %v1332
        %v1400 = vpop.f32.mrf.mxu0
        %v1401 = vadd.f32 %v1266, %v1400
        %v1402 = vpop.f32.mrf.mxu0
        %1403 = vdwg.mxu0
        %v1406 = vunpack.c.l.s4 1966171168
        %v1407 = vunpack.c.0.s8 %v1406
        %v1408 = vlaneseq
        %v1409 = vshrl.u32 %v1408, 7
        %v1410 = vsub.s32 %v1407, %v1409
        %v1411 = vrot.slane %v1401, %v1410
        %v1412 = vcombine.high %v1411, %v1411
        %v1414 = vunpack.c.l.s4 1966171168
        %v1415 = vunpack.c.0.s8 %v1414
        %v1416 = vlaneseq
        %v1417 = vshrl.u32 %v1416, 7
        %v1418 = vsub.s32 %v1415, %v1417
        %v1419 = vrot.slane %v1411, %v1418
        %v1421 = vunpack.c.l.s4 1966171168
        %v1422 = vunpack.c.0.s8 %v1421
        %v1423 = vlaneseq
        %v1424 = vshrl.u32 %v1423, 7
        %v1425 = vsub.s32 %v1422, %v1424
        %v1426 = vrot.slane %v1412, %v1425
        %1429 = vst [vmem:[%s247] sm:$0x1] %v1419
        %1430 = vst [vmem:[%s247 + $0x1] sm:$0x1] %v1426
        %s1431 = sand.u32 %s159, 1
        %s1432 = scalar_lea.sflag [#allocation5], %s1431
        %s1433 = sand.u32 %s159, 1
        %s1434 = smul.addr %s1433, 2
        %s1435 = scalar_lea.vmem [#allocation4], %s1434
        // Predicated region
        $region45: #{vgg_forward.1} parent=43 // pred_check
          %p1436 = pneg %p169
        $region46: #{vgg_forward.1} parent=43 // pred_check_branch
          %1438 = sbr.rel (%p1436) target = $region48
        $region47: #{vgg_forward.1} parent=43 // pred_region
          %s1439 = smul.u32 2, %s20
          %s1441 = ssub.s32 32, 32
          %1442 = vsyncadd %s1432, %s1441
          %s1443 = smul.addr %s1439, 16
          %s1444 = scalar_lea.hbm %s6, %s1443
          %s1445 = sshll.u32 %s1435, 4
          %s1446 = int_to_ptr.vmem [resolvable:$true] %s1445
          %1451 = dma.vmem_to_hbm [thread:$0]  %s1446, 32, %s1444, %s1432, 16, 16, 1
        $region48: #{vgg_forward.1} parent=43 // pred_fallthru
          _
      $region44: #{vgg_forward.1} parent=5 // pred_fallthru
        _
      %p1452 = scmp.le.s32.totalorder 2, %s15
      // Predicated region
      $region49: #{vgg_forward.1} parent=5 // pred_check
        %p1453 = pneg %p1452
      $region50: #{vgg_forward.1} parent=5 // pred_check_branch
        %1455 = sbr.rel (%p1453) target = $region52
      $region51: #{vgg_forward.1} parent=5 // pred_region
        %s1456 = ssub.s32 %s15, 2
        // Predicated region
        $region53: #{vgg_forward.1} parent=51 // pred_check
          %p1457 = pneg %p175
        $region54: #{vgg_forward.1} parent=51 // pred_check_branch
          %1459 = sbr.rel (%p1457) target = $region56
        $region55: #{vgg_forward.1} parent=51 // pred_region
          %s1460 = sand.u32 %s160, 1
          %s1461 = scalar_lea.sflag [#allocation5], %s1460
          %s1462 = sand.u32 %s160, 1
          %s1463 = smul.addr %s1462, 2
          %s1464 = scalar_lea.vmem [#allocation4], %s1463
          %1465 = dma.done %s1461, 32
        $region56: #{vgg_forward.1} parent=51 // pred_fallthru
          _
      $region52: #{vgg_forward.1} parent=5 // pred_fallthru
        _
    $region6: #{vgg_forward.1} parent=1 // loop_footer
      %s19 = sadd.s32 1, %s15
    $region7: #{vgg_forward.1} parent=1 // loop_footer_branch
      %14 = sbr.rel target = $region3
    $region8: #{vgg_forward.1} parent=1 // loop_exit
      _
    %1466 = vsyncpa [#allocation5], 1
    %s1467 = scalar_lea.sflag [#allocation5], 1
    %1468 = vsyncpa %s1467, 1

</llo_original>
